<compile_context>
chip_gen: v6e
topology: v6e:2x2x1
jax: 0.10.0
libtpu: 0.0.40
codegen_flags: <defaults>
</compile_context>

<pallas_src>
import functools

import jax
import jax.numpy as jnp
from jax.experimental import pallas as pl
from jax.experimental.pallas import tpu as pltpu


def _round_up(n, m):
    return ((n + m - 1) // m) * m


def _vmem_capacity_bytes():
    """Generation-aware VMEM capacity (v5e/v6e: 128 MiB/TC, v7x: 64 MiB/TC)."""
    try:
        return int(pltpu.get_tpu_info().vmem_capacity_bytes)
    except Exception:
        return 64 << 20          # conservative fallback = v7x per-TC VMEM


def _num_tensorcores():
    """Best-effort TensorCores-per-chip count (v7x: 2, v5e/v6e: 1)."""
    try:
        info = pltpu.get_tpu_info()
        for name in ("num_cores", "core_count", "num_tensorcores",
                     "tensorcore_count"):
            if hasattr(info, name):
                return max(int(getattr(info, name)), 1)
    except Exception:
        pass
    try:
        dev = jax.devices()[0]
        for name in ("num_cores", "core_count"):
            if hasattr(dev, name):
                return max(int(getattr(dev, name)), 1)
    except Exception:
        pass
    return 1


def _pick_time_chunk(T, per_step_bytes, budget_bytes, max_chunk=512):
    """Largest time chunk (multiple of 8 when chunked) fitting the VMEM budget."""
    cap = max(budget_bytes // max(per_step_bytes, 1), 1)
    cap = min(cap, max_chunk)
    if T <= min(cap, 32):
        return int(T)                                  # single fully-unrolled chunk
    tc = min(_round_up(T, 8), max((cap // 8) * 8, 1))
    return int(max(tc, 1))


def _lstm_kernel(x_ref, wih_ref, whh_ref, b_ref, wlin_ref, blin_ref,
                 out_ref, h_sc, c_sc, xw_sc, *, seq_len, mask_steps):
    chunk = pl.program_id(1)
    Bb, Hp = h_sc.shape
    Tc = xw_sc.shape[0] // Bb

    @pl.when(chunk == 0)
    def _():
        # TODO(synk): optional (h0, c0) argument of nn.LSTM not plumbed
        # through; defaults to zeros (matches h=None in the reference forward).
        h_sc[...] = jnp.zeros_like(h_sc)
        c_sc[...] = jnp.zeros_like(c_sc)

    # Hoisted input projection for the whole time chunk: ONE MXU matmul
    # instead of Tc tiny matmuls on the serial critical path.  Kept in f32 so
    # the per-step (Bb, 4Hp) read stays an exactly (8,128)-tile-aligned load
    # (a bf16 scratch would put every odd step's read mid-tile).
    xw_sc[...] = (
        jnp.dot(x_ref[...], wih_ref[...], preferred_element_type=jnp.float32)
        + b_ref[...]).astype(xw_sc.dtype)                # (Tc*Bb, 4Hp) f32

    # TODO(synk): staging W_hh in the MXU across the chunk
    # (pltpu.matmul_push_rhs / matmul_acc_lhs / matmul_pop) would remove the
    # per-step weight re-push; kept on jnp.dot for lowering robustness.
    whh = whh_ref[...]                                   # (Hp, 4Hp) bf16
    t_base = chunk * Tc

    def step(t, carry):
        h, c = carry                                     # f32 registers
        row = pl.multiple_of(t * Bb, Bb)
        gates = xw_sc[pl.ds(row, Bb), :] + jnp.dot(
            h.astype(whh.dtype), whh, preferred_element_type=jnp.float32)
        # sigmoid(x) = 0.5*tanh(0.5*x) + 0.5 : one native EUP op per gate
        # (VALU has slack; shortens the serial EUP dependency chain).
        i_g = 0.5 * jnp.tanh(0.5 * gates[:, 0 * Hp:1 * Hp]) + 0.5
        f_g = 0.5 * jnp.tanh(0.5 * gates[:, 1 * Hp:2 * Hp]) + 0.5
        g_g = jnp.tanh(gates[:, 2 * Hp:3 * Hp])
        o_g = 0.5 * jnp.tanh(0.5 * gates[:, 3 * Hp:4 * Hp]) + 0.5
        c_new = f_g * c + i_g * g_g
        h_new = o_g * jnp.tanh(c_new)
        if mask_steps:
            # Zero-padded timesteps are NOT a no-op (gates = bias would shift
            # h); carry h/c through unchanged for t >= seq_len.
            valid = (t_base + t) < seq_len
            h_new = jnp.where(valid, h_new, h)
            c_new = jnp.where(valid, c_new, c)
        return h_new, c_new

    # Always hand the LLO an unrolled body; gate the factor on Hp so unrolled
    # live state stays under the 64-vreg budget (no spills on the serial path).
    if Tc <= 32:
        unroll = True
    elif Hp >= 512:
        unroll = 2
    elif Hp >= 256:
        unroll = 4
    else:
        unroll = 8          # Tc is a multiple of 8 whenever Tc > 32

    h_out, c_out = jax.lax.fori_loop(
        0, Tc, step, (h_sc[...], c_sc[...]), unroll=unroll)

    # Spill carries only at chunk boundaries.
    h_sc[...] = h_out
    c_sc[...] = c_out

    @pl.when(chunk == pl.num_programs(1) - 1)
    def _():
        out_ref[...] = (
            jnp.dot(h_out.astype(wlin_ref.dtype), wlin_ref[...],
                    preferred_element_type=jnp.float32)
            + blin_ref[...]).astype(out_ref.dtype)       # lane-dense (Bb, Op)


def classification_lstm(x, kparams, output_size, *, batch_blocks=None,
                        max_chunk=512):
    """x: (batch, input_size, seq_len) -> logits (batch, output_size)."""
    wih_t, whh_t, bias, wlin_t, blin = kparams
    B, I, T = x.shape
    Hp = whh_t.shape[0]
    Op = wlin_t.shape[1]
    Bp = _round_up(B, 8)

    # Batch-block the grid only when a second TensorCore exists (v7x): on
    # 1-TC chips splitting would roughly double the serial step count.
    if batch_blocks is None:
        batch_blocks = 2 if (_num_tensorcores() >= 2 and Bp % 16 == 0) else 1
    n_bblk = batch_blocks if (batch_blocks >= 1 and
                              Bp % (8 * batch_blocks) == 0) else 1
    Bb = Bp // n_bblk

    # --- Generation-aware VMEM budgeting -----------------------------------
    capacity = _vmem_capacity_bytes()
    Ipad = _round_up(I, 128)
    fixed_bytes = (
        2 * (Ipad * 4 * Hp + Hp * 4 * Hp + Hp * Op) * 2   # bf16 weights, double-buffered
        + 2 * 8 * (4 * Hp + Op) * 4                       # f32 biases (8-sublane padded)
        + 2 * Bb * Hp * 4                                 # h / c carries
        + 2 * Bb * Op * 4)                                # output block
    per_step_bytes = 2 * Bb * Ipad * 2 + Bb * 4 * Hp * 4  # x block (x2 bufs) + xw row
    budget = int(0.65 * capacity) - fixed_bytes
    Tc = _pick_time_chunk(T, per_step_bytes, budget, max_chunk=max_chunk)
    n_chunks = -(-T // Tc)
    if n_chunks > 1:                                      # balance chunk sizes
        Tc = min(Tc, _round_up(-(-T // n_chunks), 8))
        n_chunks = -(-T // Tc)
    Tp = n_chunks * Tc
    mask_steps = Tp != T

    vmem_need = fixed_bytes + Tc * per_step_bytes
    vmem_limit = int(min(max(vmem_need + (8 << 20), 32 << 20),
                         int(0.75 * capacity)))
    if vmem_need + (2 << 20) > vmem_limit:
        vmem_limit = int(min(vmem_need + (2 << 20), capacity))

    # --- Layout: (B, I, T) -> time-major rows grouped by batch block --------
    # row index = (bblk * Tp + t) * Bb + j  -> each (batch-block, time-chunk)
    # grid cell is one contiguous row block and the hoisted input projection
    # is a plain 2-D MXU matmul with 8-aligned per-step sublane windows.
    x_tbi = jnp.transpose(x, (2, 0, 1))                               # (T, B, I)
    x_tbi = jnp.pad(x_tbi, ((0, Tp - T), (0, Bp - B), (0, 0)))        # (Tp, Bp, I)
    x_rows = (x_tbi.reshape(Tp, n_bblk, Bb, I)
              .transpose(1, 0, 2, 3)
              .reshape(n_bblk * Tp * Bb, I)
              .astype(jnp.bfloat16))

    kernel = functools.partial(_lstm_kernel, seq_len=T, mask_steps=mask_steps)

    grid_spec = pltpu.PrefetchScalarGridSpec(
        num_scalar_prefetch=0,
        grid=(n_bblk, n_chunks),
        in_specs=[
            # NOTE: weight/bias blocks are grid-invariant; pl.Buffered(1)
            # would single-buffer them, left at default depth for lowering
            # robustness (the double buffers ARE counted in fixed_bytes).
            pl.BlockSpec((Tc * Bb, I), lambda b, c: (b * n_chunks + c, 0)),
            pl.BlockSpec((I, 4 * Hp), lambda b, c: (0, 0)),            # W_ih^T
            pl.BlockSpec((Hp, 4 * Hp), lambda b, c: (0, 0)),           # W_hh^T
            pl.BlockSpec((1, 4 * Hp), lambda b, c: (0, 0)),            # folded bias
            pl.BlockSpec((Hp, Op), lambda b, c: (0, 0)),               # W_lin^T
            pl.BlockSpec((1, Op), lambda b, c: (0, 0)),                # b_lin
        ],
        out_specs=pl.BlockSpec((Bb, Op), lambda b, c: (b, 0)),
        scratch_shapes=[
            pltpu.VMEM((Bb, Hp), jnp.float32),                 # h carry
            pltpu.VMEM((Bb, Hp), jnp.float32),                 # c carry
            pltpu.VMEM((Tc * Bb, 4 * Hp), jnp.float32),        # hoisted x@W_ih^T + b
        ],
    )

    out_p = pl.pallas_call(
        kernel,
        out_shape=jax.ShapeDtypeStruct((Bp, Op), jnp.float32),
        grid_spec=grid_spec,
        compiler_params=pltpu.CompilerParams(
            dimension_semantics=("parallel", "arbitrary"),
            vmem_limit_bytes=vmem_limit),
    )(x_rows, wih_t, whh_t, bias, wlin_t, blin)

    return out_p[:B, :output_size]


def init_params(key, input_size, hidden_size, output_size):
    """PyTorch-layout f32 params with U(-1/sqrt(H), 1/sqrt(H)) init."""
    k = jax.random.split(key, 6)
    bound = 1.0 / jnp.sqrt(hidden_size)
    w_ih = jax.random.uniform(k[0], (4 * hidden_size, input_size),
                              jnp.float32, -bound, bound)
    w_hh = jax.random.uniform(k[1], (4 * hidden_size, hidden_size),
                              jnp.float32, -bound, bound)
    b_ih = jax.random.uniform(k[2], (4 * hidden_size,), jnp.float32, -bound, bound)
    b_hh = jax.random.uniform(k[3], (4 * hidden_size,), jnp.float32, -bound, bound)
    w_lin = jax.random.uniform(k[4], (output_size, hidden_size),
                               jnp.float32, -bound, bound)
    b_lin = jax.random.uniform(k[5], (output_size,), jnp.float32, -bound, bound)
    return w_ih, w_hh, b_ih, b_hh, w_lin, b_lin


def prepare_params(raw, hidden_size):
    """Transpose / lane-pad / bf16-cast PyTorch-layout params for the kernel."""
    # TODO(synk): a small-H (4H = 128) specialization that avoids padding each
    # gate to 128 lanes (masked sigmoid/tanh on one lane tile + pltpu.roll)
    # would shrink the recurrent matmul ~16x for H <= 32; not implemented.
    w_ih, w_hh, b_ih, b_hh, w_lin, b_lin = raw
    H = hidden_size
    I = w_ih.shape[1]
    O = w_lin.shape[0]
    Hp = _round_up(H, 128)
    Op = _round_up(O, 128)

    def pad_gate_rows(w):  # (4H, X) -> (4Hp, X), zero-pad each gate block
        X = w.shape[1]
        return jnp.pad(w.reshape(4, H, X),
                       ((0, 0), (0, Hp - H), (0, 0))).reshape(4 * Hp, X)

    w_ih_p = pad_gate_rows(w_ih)                                    # (4Hp, I)
    w_hh_p = jnp.pad(pad_gate_rows(w_hh), ((0, 0), (0, Hp - H)))    # (4Hp, Hp)
    bias_p = jnp.pad((b_ih + b_hh).reshape(4, H),
                     ((0, 0), (0, Hp - H))).reshape(1, 4 * Hp)      # (1, 4Hp)
    w_lin_p = jnp.pad(w_lin, ((0, Op - O), (0, Hp - H)))            # (Op, Hp)
    b_lin_p = jnp.pad(b_lin, (0, Op - O)).reshape(1, Op)            # (1, Op)

    return (w_ih_p.T.astype(jnp.bfloat16),      # (I,  4Hp)
            w_hh_p.T.astype(jnp.bfloat16),      # (Hp, 4Hp)
            bias_p.astype(jnp.float32),         # (1,  4Hp)
            w_lin_p.T.astype(jnp.bfloat16),     # (Hp, Op)
            b_lin_p.astype(jnp.float32))        # (1,  Op)


def _reference(x, kparams, output_size):
    """Pure-JAX reference mirroring the kernel's bf16 weight/input precision."""
    wih_t, whh_t, bias, wlin_t, blin = kparams
    wih = wih_t.astype(jnp.float32)
    whh = whh_t.astype(jnp.float32)
    wlin = wlin_t.astype(jnp.float32)
    Hp = whh_t.shape[0]
    B = x.shape[0]
    x_tbi = jnp.transpose(x, (2, 0, 1)).astype(jnp.bfloat16).astype(jnp.float32)

    def step(carry, x_t):
        h, c = carry
        h_mm = h.astype(jnp.bfloat16).astype(jnp.float32)
        g = x_t @ wih + h_mm @ whh + bias
        i = jax.nn.sigmoid(g[:, 0 * Hp:1 * Hp])
        f = jax.nn.sigmoid(g[:, 1 * Hp:2 * Hp])
        gg = jnp.tanh(g[:, 2 * Hp:3 * Hp])
        o = jax.nn.sigmoid(g[:, 3 * Hp:4 * Hp])
        c = f * c + i * gg
        h = o * jnp.tanh(c)
        return (h, c), None

    h0 = jnp.zeros((B, Hp), jnp.float32)
    (h, _), _ = jax.lax.scan(step, (h0, h0), x_tbi)
    return (h @ wlin + blin)[:, :output_size]


def _run_case(key, batch, input_size, hidden_size, output_size, seq_len,
              batch_blocks=None, max_chunk=512):
    k_x, k_p = jax.random.split(key)
    x = jax.random.normal(k_x, (batch, input_size, seq_len), jnp.float32)
    raw = init_params(k_p, input_size, hidden_size, output_size)
    kparams = prepare_params(raw, hidden_size)

    out = classification_lstm(x, kparams, output_size,
                              batch_blocks=batch_blocks, max_chunk=max_chunk)
    out = jax.block_until_ready(out)

    ref = _reference(x, kparams, output_size)
    assert out.shape == (batch, output_size)
    # Tolerance accounts for bf16 weights/inputs and EUP-vs-XLA transcendentals.
    assert jnp.allclose(out, ref, atol=2e-3, rtol=2e-3), (out, ref)


if __name__ == "__main__":
    key = jax.random.PRNGKey(0)
    k1, k2, k3 = jax.random.split(key, 3)

    # 1) Module-sized demo shape (batch=2, input=16, hidden=32, seq=8).
    _run_case(k1, batch=2, input_size=16, hidden_size=32, output_size=8,
              seq_len=8)
    # 2) Batch-block (2nd-TensorCore) path + multi-chunk carry + non-divisor-T
    #    masking (T=40, Tc=16 -> 3 chunks, 8 masked tail steps).
    _run_case(k2, batch=16, input_size=16, hidden_size=32, output_size=8,
              seq_len=40, batch_blocks=2, max_chunk=16)
    # 3) Unrolled (Tc > 32) recurrence path with a masked tail (T=72, Tc=40).
    _run_case(k3, batch=4, input_size=24, hidden_size=48, output_size=10,
              seq_len=72, max_chunk=40)

    # TODO(synk): benchmark/tune at production shapes with xprof min-of-N;
    # these demo shapes are fixed-overhead / padding dominated.
    print("KERNEL_OK")
</pallas_src>

<mosaic_0001>
module attributes {stable_mosaic.version = 11 : i64} {
  func.func @_lstm_kernel(%arg0: i32, %arg1: i32, %arg2: memref<64x16xbf16, #tpu.memory_space<vmem>>, %arg3: memref<16x512xbf16, #tpu.memory_space<vmem>>, %arg4: memref<128x512xbf16, #tpu.memory_space<vmem>>, %arg5: memref<1x512xf32, #tpu.memory_space<vmem>>, %arg6: memref<128x128xbf16, #tpu.memory_space<vmem>>, %arg7: memref<1x128xf32, #tpu.memory_space<vmem>>, %arg8: memref<8x128xf32, #tpu.memory_space<vmem>>, %arg9: memref<8x128xf32, #tpu.memory_space<vmem>>, %arg10: memref<8x128xf32, #tpu.memory_space<vmem>>, %arg11: memref<64x512xf32, #tpu.memory_space<vmem>>) attributes {dimension_semantics = [#tpu.dimension_semantics<parallel>, #tpu.dimension_semantics<arbitrary>], iteration_bounds = array<i64: 1, 1>, scalar_prefetch = 0 : i64, scratch_operands = 3 : i64, tpu.core_type = #tpu.core_type<tc>, window_params = [{transform_indices = @transform_0, window_bounds = array<i64: 64, 16>}, {pipeline_mode = #tpu.pipeline_mode<synchronous>, transform_indices = @transform_1, window_bounds = array<i64: 16, 512>}, {pipeline_mode = #tpu.pipeline_mode<synchronous>, transform_indices = @transform_2, window_bounds = array<i64: 128, 512>}, {pipeline_mode = #tpu.pipeline_mode<synchronous>, transform_indices = @transform_3, window_bounds = array<i64: 1, 512>}, {pipeline_mode = #tpu.pipeline_mode<synchronous>, transform_indices = @transform_4, window_bounds = array<i64: 128, 128>}, {pipeline_mode = #tpu.pipeline_mode<synchronous>, transform_indices = @transform_5, window_bounds = array<i64: 1, 128>}, {transform_indices = @transform_6, window_bounds = array<i64: 8, 128>}]} {
    %c0_i32 = arith.constant 0 : i32
    %0 = arith.cmpi eq, %arg1, %c0_i32 : i32
    %1 = arith.extui %0 : i1 to i32
    %c0_i32_0 = arith.constant 0 : i32
    %2 = arith.cmpi ne, %1, %c0_i32_0 : i32
    scf.if %2 {
      %cst_117 = arith.constant 0.000000e+00 : f32
      %322 = vector.broadcast %cst_117 : f32 to vector<8x128xf32>
      %c0_118 = arith.constant 0 : index
      %c0_119 = arith.constant 0 : index
      %323 = vector.load %arg9[%c0_118, %c0_119] : memref<8x128xf32, #tpu.memory_space<vmem>>, vector<8x128xf32>
      tpu.vector_store %arg9[%c0_118, %c0_119], %322 {strides = array<i32>} : memref<8x128xf32, #tpu.memory_space<vmem>>, vector<8x128xf32>,
      %cst_120 = arith.constant 0.000000e+00 : f32
      %324 = vector.broadcast %cst_120 : f32 to vector<8x128xf32>
      %c0_121 = arith.constant 0 : index
      %c0_122 = arith.constant 0 : index
      %325 = vector.load %arg10[%c0_121, %c0_122] : memref<8x128xf32, #tpu.memory_space<vmem>>, vector<8x128xf32>
      tpu.vector_store %arg10[%c0_121, %c0_122], %324 {strides = array<i32>} : memref<8x128xf32, #tpu.memory_space<vmem>>, vector<8x128xf32>,
    } else {
    }
    %c0 = arith.constant 0 : index
    %c0_1 = arith.constant 0 : index
    %3 = vector.load %arg2[%c0, %c0_1] : memref<64x16xbf16, #tpu.memory_space<vmem>>, vector<64x16xbf16>
    %c0_2 = arith.constant 0 : index
    %c0_3 = arith.constant 0 : index
    %4 = vector.load %arg3[%c0_2, %c0_3] : memref<16x512xbf16, #tpu.memory_space<vmem>>, vector<16x512xbf16>
    %cst = arith.constant dense<0.000000e+00> : vector<64x512xf32>
    %5 = tpu.matmul %3, %4, %cst {dimension_numbers = #tpu.dot_dimension_numbers<[1], [0], [0], [1], [0, 0, 1, 1], [], []>} : vector<64x16xbf16>, vector<16x512xbf16>, vector<64x512xf32> -> vector<64x512xf32>
    %c0_4 = arith.constant 0 : index
    %c0_5 = arith.constant 0 : index
    %6 = vector.load %arg5[%c0_4, %c0_5] : memref<1x512xf32, #tpu.memory_space<vmem>>, vector<1x512xf32>
    %7 = vector.broadcast %6 : vector<1x512xf32> to vector<64x512xf32>
    %8 = arith.addf %5, %7 : vector<64x512xf32>
    %c0_6 = arith.constant 0 : index
    %c0_7 = arith.constant 0 : index
    %9 = vector.load %arg11[%c0_6, %c0_7] : memref<64x512xf32, #tpu.memory_space<vmem>>, vector<64x512xf32>
    tpu.vector_store %arg11[%c0_6, %c0_7], %8 {strides = array<i32>} : memref<64x512xf32, #tpu.memory_space<vmem>>, vector<64x512xf32>,
    %c0_8 = arith.constant 0 : index
    %c0_9 = arith.constant 0 : index
    %10 = vector.load %arg4[%c0_8, %c0_9] : memref<128x512xbf16, #tpu.memory_space<vmem>>, vector<128x512xbf16>
    %c0_10 = arith.constant 0 : index
    %c0_11 = arith.constant 0 : index
    %11 = vector.load %arg9[%c0_10, %c0_11] : memref<8x128xf32, #tpu.memory_space<vmem>>, vector<8x128xf32>
    %c0_12 = arith.constant 0 : index
    %c0_13 = arith.constant 0 : index
    %12 = vector.load %arg10[%c0_12, %c0_13] : memref<8x128xf32, #tpu.memory_space<vmem>>, vector<8x128xf32>
    %c0_i32_14 = arith.constant 0 : i32
    %c8_i32 = arith.constant 8 : i32
    %13 = arith.muli %c0_i32_14, %c8_i32 : i32
    %14 = tpu.assume_multiple %13, 8 : i32
    %15 = arith.index_cast %14 : i32 to index
    %c0_15 = arith.constant 0 : index
    %16 = vector.load %arg11[%15, %c0_15] : memref<64x512xf32, #tpu.memory_space<vmem>>, vector<8x512xf32>
    %17 = arith.truncf %11 : vector<8x128xf32> to vector<8x128xbf16>
    %cst_16 = arith.constant dense<0.000000e+00> : vector<8x512xf32>
    %18 = tpu.matmul %17, %10, %cst_16 {dimension_numbers = #tpu.dot_dimension_numbers<[1], [0], [0], [1], [0, 0, 1, 1], [], []>} : vector<8x128xbf16>, vector<128x512xbf16>, vector<8x512xf32> -> vector<8x512xf32>
    %19 = arith.addf %16, %18 : vector<8x512xf32>
    %20 = vector.extract_strided_slice %19 {offsets = [0, 0], sizes = [8, 128], strides = [1, 1]} : vector<8x512xf32> to vector<8x128xf32>
    %cst_17 = arith.constant 5.000000e-01 : f32
    %21 = vector.broadcast %cst_17 : f32 to vector<8x128xf32>
    %22 = arith.mulf %21, %20 : vector<8x128xf32>
    %23 = math.tanh %22 : vector<8x128xf32>
    %cst_18 = arith.constant 5.000000e-01 : f32
    %24 = vector.broadcast %cst_18 : f32 to vector<8x128xf32>
    %25 = arith.mulf %24, %23 : vector<8x128xf32>
    %cst_19 = arith.constant 5.000000e-01 : f32
    %26 = vector.broadcast %cst_19 : f32 to vector<8x128xf32>
    %27 = arith.addf %25, %26 : vector<8x128xf32>
    %28 = vector.extract_strided_slice %19 {offsets = [0, 128], sizes = [8, 128], strides = [1, 1]} : vector<8x512xf32> to vector<8x128xf32>
    %cst_20 = arith.constant 5.000000e-01 : f32
    %29 = vector.broadcast %cst_20 : f32 to vector<8x128xf32>
    %30 = arith.mulf %29, %28 : vector<8x128xf32>
    %31 = math.tanh %30 : vector<8x128xf32>
    %cst_21 = arith.constant 5.000000e-01 : f32
    %32 = vector.broadcast %cst_21 : f32 to vector<8x128xf32>
    %33 = arith.mulf %32, %31 : vector<8x128xf32>
    %cst_22 = arith.constant 5.000000e-01 : f32
    %34 = vector.broadcast %cst_22 : f32 to vector<8x128xf32>
    %35 = arith.addf %33, %34 : vector<8x128xf32>
    %36 = vector.extract_strided_slice %19 {offsets = [0, 256], sizes = [8, 128], strides = [1, 1]} : vector<8x512xf32> to vector<8x128xf32>
    %37 = math.tanh %36 : vector<8x128xf32>
    %38 = vector.extract_strided_slice %19 {offsets = [0, 384], sizes = [8, 128], strides = [1, 1]} : vector<8x512xf32> to vector<8x128xf32>
    %cst_23 = arith.constant 5.000000e-01 : f32
    %39 = vector.broadcast %cst_23 : f32 to vector<8x128xf32>
    %40 = arith.mulf %39, %38 : vector<8x128xf32>
    %41 = math.tanh %40 : vector<8x128xf32>
    %cst_24 = arith.constant 5.000000e-01 : f32
    %42 = vector.broadcast %cst_24 : f32 to vector<8x128xf32>
    %43 = arith.mulf %42, %41 : vector<8x128xf32>
    %cst_25 = arith.constant 5.000000e-01 : f32
    %44 = vector.broadcast %cst_25 : f32 to vector<8x128xf32>
    %45 = arith.addf %43, %44 : vector<8x128xf32>
    %46 = arith.mulf %35, %12 : vector<8x128xf32>
    %47 = arith.mulf %27, %37 : vector<8x128xf32>
    %48 = arith.addf %46, %47 : vector<8x128xf32>
    %49 = math.tanh %48 : vector<8x128xf32>
    %50 = arith.mulf %45, %49 : vector<8x128xf32>
    %c1_i32 = arith.constant 1 : i32
    %c8_i32_26 = arith.constant 8 : i32
    %51 = arith.muli %c1_i32, %c8_i32_26 : i32
    %52 = tpu.assume_multiple %51, 8 : i32
    %53 = arith.index_cast %52 : i32 to index
    %c0_27 = arith.constant 0 : index
    %54 = vector.load %arg11[%53, %c0_27] : memref<64x512xf32, #tpu.memory_space<vmem>>, vector<8x512xf32>
    %55 = arith.truncf %50 : vector<8x128xf32> to vector<8x128xbf16>
    %cst_28 = arith.constant dense<0.000000e+00> : vector<8x512xf32>
    %56 = tpu.matmul %55, %10, %cst_28 {dimension_numbers = #tpu.dot_dimension_numbers<[1], [0], [0], [1], [0, 0, 1, 1], [], []>} : vector<8x128xbf16>, vector<128x512xbf16>, vector<8x512xf32> -> vector<8x512xf32>
    %57 = arith.addf %54, %56 : vector<8x512xf32>
    %58 = vector.extract_strided_slice %57 {offsets = [0, 0], sizes = [8, 128], strides = [1, 1]} : vector<8x512xf32> to vector<8x128xf32>
    %cst_29 = arith.constant 5.000000e-01 : f32
    %59 = vector.broadcast %cst_29 : f32 to vector<8x128xf32>
    %60 = arith.mulf %59, %58 : vector<8x128xf32>
    %61 = math.tanh %60 : vector<8x128xf32>
    %cst_30 = arith.constant 5.000000e-01 : f32
    %62 = vector.broadcast %cst_30 : f32 to vector<8x128xf32>
    %63 = arith.mulf %62, %61 : vector<8x128xf32>
    %cst_31 = arith.constant 5.000000e-01 : f32
    %64 = vector.broadcast %cst_31 : f32 to vector<8x128xf32>
    %65 = arith.addf %63, %64 : vector<8x128xf32>
    %66 = vector.extract_strided_slice %57 {offsets = [0, 128], sizes = [8, 128], strides = [1, 1]} : vector<8x512xf32> to vector<8x128xf32>
    %cst_32 = arith.constant 5.000000e-01 : f32
    %67 = vector.broadcast %cst_32 : f32 to vector<8x128xf32>
    %68 = arith.mulf %67, %66 : vector<8x128xf32>
    %69 = math.tanh %68 : vector<8x128xf32>
    %cst_33 = arith.constant 5.000000e-01 : f32
    %70 = vector.broadcast %cst_33 : f32 to vector<8x128xf32>
    %71 = arith.mulf %70, %69 : vector<8x128xf32>
    %cst_34 = arith.constant 5.000000e-01 : f32
    %72 = vector.broadcast %cst_34 : f32 to vector<8x128xf32>
    %73 = arith.addf %71, %72 : vector<8x128xf32>
    %74 = vector.extract_strided_slice %57 {offsets = [0, 256], sizes = [8, 128], strides = [1, 1]} : vector<8x512xf32> to vector<8x128xf32>
    %75 = math.tanh %74 : vector<8x128xf32>
    %76 = vector.extract_strided_slice %57 {offsets = [0, 384], sizes = [8, 128], strides = [1, 1]} : vector<8x512xf32> to vector<8x128xf32>
    %cst_35 = arith.constant 5.000000e-01 : f32
    %77 = vector.broadcast %cst_35 : f32 to vector<8x128xf32>
    %78 = arith.mulf %77, %76 : vector<8x128xf32>
    %79 = math.tanh %78 : vector<8x128xf32>
    %cst_36 = arith.constant 5.000000e-01 : f32
    %80 = vector.broadcast %cst_36 : f32 to vector<8x128xf32>
    %81 = arith.mulf %80, %79 : vector<8x128xf32>
    %cst_37 = arith.constant 5.000000e-01 : f32
    %82 = vector.broadcast %cst_37 : f32 to vector<8x128xf32>
    %83 = arith.addf %81, %82 : vector<8x128xf32>
    %84 = arith.mulf %73, %48 : vector<8x128xf32>
    %85 = arith.mulf %65, %75 : vector<8x128xf32>
    %86 = arith.addf %84, %85 : vector<8x128xf32>
    %87 = math.tanh %86 : vector<8x128xf32>
    %88 = arith.mulf %83, %87 : vector<8x128xf32>
    %c2_i32 = arith.constant 2 : i32
    %c8_i32_38 = arith.constant 8 : i32
    %89 = arith.muli %c2_i32, %c8_i32_38 : i32
    %90 = tpu.assume_multiple %89, 8 : i32
    %91 = arith.index_cast %90 : i32 to index
    %c0_39 = arith.constant 0 : index
    %92 = vector.load %arg11[%91, %c0_39] : memref<64x512xf32, #tpu.memory_space<vmem>>, vector<8x512xf32>
    %93 = arith.truncf %88 : vector<8x128xf32> to vector<8x128xbf16>
    %cst_40 = arith.constant dense<0.000000e+00> : vector<8x512xf32>
    %94 = tpu.matmul %93, %10, %cst_40 {dimension_numbers = #tpu.dot_dimension_numbers<[1], [0], [0], [1], [0, 0, 1, 1], [], []>} : vector<8x128xbf16>, vector<128x512xbf16>, vector<8x512xf32> -> vector<8x512xf32>
    %95 = arith.addf %92, %94 : vector<8x512xf32>
    %96 = vector.extract_strided_slice %95 {offsets = [0, 0], sizes = [8, 128], strides = [1, 1]} : vector<8x512xf32> to vector<8x128xf32>
    %cst_41 = arith.constant 5.000000e-01 : f32
    %97 = vector.broadcast %cst_41 : f32 to vector<8x128xf32>
    %98 = arith.mulf %97, %96 : vector<8x128xf32>
    %99 = math.tanh %98 : vector<8x128xf32>
    %cst_42 = arith.constant 5.000000e-01 : f32
    %100 = vector.broadcast %cst_42 : f32 to vector<8x128xf32>
    %101 = arith.mulf %100, %99 : vector<8x128xf32>
    %cst_43 = arith.constant 5.000000e-01 : f32
    %102 = vector.broadcast %cst_43 : f32 to vector<8x128xf32>
    %103 = arith.addf %101, %102 : vector<8x128xf32>
    %104 = vector.extract_strided_slice %95 {offsets = [0, 128], sizes = [8, 128], strides = [1, 1]} : vector<8x512xf32> to vector<8x128xf32>
    %cst_44 = arith.constant 5.000000e-01 : f32
    %105 = vector.broadcast %cst_44 : f32 to vector<8x128xf32>
    %106 = arith.mulf %105, %104 : vector<8x128xf32>
    %107 = math.tanh %106 : vector<8x128xf32>
    %cst_45 = arith.constant 5.000000e-01 : f32
    %108 = vector.broadcast %cst_45 : f32 to vector<8x128xf32>
    %109 = arith.mulf %108, %107 : vector<8x128xf32>
    %cst_46 = arith.constant 5.000000e-01 : f32
    %110 = vector.broadcast %cst_46 : f32 to vector<8x128xf32>
    %111 = arith.addf %109, %110 : vector<8x128xf32>
    %112 = vector.extract_strided_slice %95 {offsets = [0, 256], sizes = [8, 128], strides = [1, 1]} : vector<8x512xf32> to vector<8x128xf32>
    %113 = math.tanh %112 : vector<8x128xf32>
    %114 = vector.extract_strided_slice %95 {offsets = [0, 384], sizes = [8, 128], strides = [1, 1]} : vector<8x512xf32> to vector<8x128xf32>
    %cst_47 = arith.constant 5.000000e-01 : f32
    %115 = vector.broadcast %cst_47 : f32 to vector<8x128xf32>
    %116 = arith.mulf %115, %114 : vector<8x128xf32>
    %117 = math.tanh %116 : vector<8x128xf32>
    %cst_48 = arith.constant 5.000000e-01 : f32
    %118 = vector.broadcast %cst_48 : f32 to vector<8x128xf32>
    %119 = arith.mulf %118, %117 : vector<8x128xf32>
    %cst_49 = arith.constant 5.000000e-01 : f32
    %120 = vector.broadcast %cst_49 : f32 to vector<8x128xf32>
    %121 = arith.addf %119, %120 : vector<8x128xf32>
    %122 = arith.mulf %111, %86 : vector<8x128xf32>
    %123 = arith.mulf %103, %113 : vector<8x128xf32>
    %124 = arith.addf %122, %123 : vector<8x128xf32>
    %125 = math.tanh %124 : vector<8x128xf32>
    %126 = arith.mulf %121, %125 : vector<8x128xf32>
    %c3_i32 = arith.constant 3 : i32
    %c8_i32_50 = arith.constant 8 : i32
    %127 = arith.muli %c3_i32, %c8_i32_50 : i32
    %128 = tpu.assume_multiple %127, 8 : i32
    %129 = arith.index_cast %128 : i32 to index
    %c0_51 = arith.constant 0 : index
    %130 = vector.load %arg11[%129, %c0_51] : memref<64x512xf32, #tpu.memory_space<vmem>>, vector<8x512xf32>
    %131 = arith.truncf %126 : vector<8x128xf32> to vector<8x128xbf16>
    %cst_52 = arith.constant dense<0.000000e+00> : vector<8x512xf32>
    %132 = tpu.matmul %131, %10, %cst_52 {dimension_numbers = #tpu.dot_dimension_numbers<[1], [0], [0], [1], [0, 0, 1, 1], [], []>} : vector<8x128xbf16>, vector<128x512xbf16>, vector<8x512xf32> -> vector<8x512xf32>
    %133 = arith.addf %130, %132 : vector<8x512xf32>
    %134 = vector.extract_strided_slice %133 {offsets = [0, 0], sizes = [8, 128], strides = [1, 1]} : vector<8x512xf32> to vector<8x128xf32>
    %cst_53 = arith.constant 5.000000e-01 : f32
    %135 = vector.broadcast %cst_53 : f32 to vector<8x128xf32>
    %136 = arith.mulf %135, %134 : vector<8x128xf32>
    %137 = math.tanh %136 : vector<8x128xf32>
    %cst_54 = arith.constant 5.000000e-01 : f32
    %138 = vector.broadcast %cst_54 : f32 to vector<8x128xf32>
    %139 = arith.mulf %138, %137 : vector<8x128xf32>
    %cst_55 = arith.constant 5.000000e-01 : f32
    %140 = vector.broadcast %cst_55 : f32 to vector<8x128xf32>
    %141 = arith.addf %139, %140 : vector<8x128xf32>
    %142 = vector.extract_strided_slice %133 {offsets = [0, 128], sizes = [8, 128], strides = [1, 1]} : vector<8x512xf32> to vector<8x128xf32>
    %cst_56 = arith.constant 5.000000e-01 : f32
    %143 = vector.broadcast %cst_56 : f32 to vector<8x128xf32>
    %144 = arith.mulf %143, %142 : vector<8x128xf32>
    %145 = math.tanh %144 : vector<8x128xf32>
    %cst_57 = arith.constant 5.000000e-01 : f32
    %146 = vector.broadcast %cst_57 : f32 to vector<8x128xf32>
    %147 = arith.mulf %146, %145 : vector<8x128xf32>
    %cst_58 = arith.constant 5.000000e-01 : f32
    %148 = vector.broadcast %cst_58 : f32 to vector<8x128xf32>
    %149 = arith.addf %147, %148 : vector<8x128xf32>
    %150 = vector.extract_strided_slice %133 {offsets = [0, 256], sizes = [8, 128], strides = [1, 1]} : vector<8x512xf32> to vector<8x128xf32>
    %151 = math.tanh %150 : vector<8x128xf32>
    %152 = vector.extract_strided_slice %133 {offsets = [0, 384], sizes = [8, 128], strides = [1, 1]} : vector<8x512xf32> to vector<8x128xf32>
    %cst_59 = arith.constant 5.000000e-01 : f32
    %153 = vector.broadcast %cst_59 : f32 to vector<8x128xf32>
    %154 = arith.mulf %153, %152 : vector<8x128xf32>
    %155 = math.tanh %154 : vector<8x128xf32>
    %cst_60 = arith.constant 5.000000e-01 : f32
    %156 = vector.broadcast %cst_60 : f32 to vector<8x128xf32>
    %157 = arith.mulf %156, %155 : vector<8x128xf32>
    %cst_61 = arith.constant 5.000000e-01 : f32
    %158 = vector.broadcast %cst_61 : f32 to vector<8x128xf32>
    %159 = arith.addf %157, %158 : vector<8x128xf32>
    %160 = arith.mulf %149, %124 : vector<8x128xf32>
    %161 = arith.mulf %141, %151 : vector<8x128xf32>
    %162 = arith.addf %160, %161 : vector<8x128xf32>
    %163 = math.tanh %162 : vector<8x128xf32>
    %164 = arith.mulf %159, %163 : vector<8x128xf32>
    %c4_i32 = arith.constant 4 : i32
    %c8_i32_62 = arith.constant 8 : i32
    %165 = arith.muli %c4_i32, %c8_i32_62 : i32
    %166 = tpu.assume_multiple %165, 8 : i32
    %167 = arith.index_cast %166 : i32 to index
    %c0_63 = arith.constant 0 : index
    %168 = vector.load %arg11[%167, %c0_63] : memref<64x512xf32, #tpu.memory_space<vmem>>, vector<8x512xf32>
    %169 = arith.truncf %164 : vector<8x128xf32> to vector<8x128xbf16>
    %cst_64 = arith.constant dense<0.000000e+00> : vector<8x512xf32>
    %170 = tpu.matmul %169, %10, %cst_64 {dimension_numbers = #tpu.dot_dimension_numbers<[1], [0], [0], [1], [0, 0, 1, 1], [], []>} : vector<8x128xbf16>, vector<128x512xbf16>, vector<8x512xf32> -> vector<8x512xf32>
    %171 = arith.addf %168, %170 : vector<8x512xf32>
    %172 = vector.extract_strided_slice %171 {offsets = [0, 0], sizes = [8, 128], strides = [1, 1]} : vector<8x512xf32> to vector<8x128xf32>
    %cst_65 = arith.constant 5.000000e-01 : f32
    %173 = vector.broadcast %cst_65 : f32 to vector<8x128xf32>
    %174 = arith.mulf %173, %172 : vector<8x128xf32>
    %175 = math.tanh %174 : vector<8x128xf32>
    %cst_66 = arith.constant 5.000000e-01 : f32
    %176 = vector.broadcast %cst_66 : f32 to vector<8x128xf32>
    %177 = arith.mulf %176, %175 : vector<8x128xf32>
    %cst_67 = arith.constant 5.000000e-01 : f32
    %178 = vector.broadcast %cst_67 : f32 to vector<8x128xf32>
    %179 = arith.addf %177, %178 : vector<8x128xf32>
    %180 = vector.extract_strided_slice %171 {offsets = [0, 128], sizes = [8, 128], strides = [1, 1]} : vector<8x512xf32> to vector<8x128xf32>
    %cst_68 = arith.constant 5.000000e-01 : f32
    %181 = vector.broadcast %cst_68 : f32 to vector<8x128xf32>
    %182 = arith.mulf %181, %180 : vector<8x128xf32>
    %183 = math.tanh %182 : vector<8x128xf32>
    %cst_69 = arith.constant 5.000000e-01 : f32
    %184 = vector.broadcast %cst_69 : f32 to vector<8x128xf32>
    %185 = arith.mulf %184, %183 : vector<8x128xf32>
    %cst_70 = arith.constant 5.000000e-01 : f32
    %186 = vector.broadcast %cst_70 : f32 to vector<8x128xf32>
    %187 = arith.addf %185, %186 : vector<8x128xf32>
    %188 = vector.extract_strided_slice %171 {offsets = [0, 256], sizes = [8, 128], strides = [1, 1]} : vector<8x512xf32> to vector<8x128xf32>
    %189 = math.tanh %188 : vector<8x128xf32>
    %190 = vector.extract_strided_slice %171 {offsets = [0, 384], sizes = [8, 128], strides = [1, 1]} : vector<8x512xf32> to vector<8x128xf32>
    %cst_71 = arith.constant 5.000000e-01 : f32
    %191 = vector.broadcast %cst_71 : f32 to vector<8x128xf32>
    %192 = arith.mulf %191, %190 : vector<8x128xf32>
    %193 = math.tanh %192 : vector<8x128xf32>
    %cst_72 = arith.constant 5.000000e-01 : f32
    %194 = vector.broadcast %cst_72 : f32 to vector<8x128xf32>
    %195 = arith.mulf %194, %193 : vector<8x128xf32>
    %cst_73 = arith.constant 5.000000e-01 : f32
    %196 = vector.broadcast %cst_73 : f32 to vector<8x128xf32>
    %197 = arith.addf %195, %196 : vector<8x128xf32>
    %198 = arith.mulf %187, %162 : vector<8x128xf32>
    %199 = arith.mulf %179, %189 : vector<8x128xf32>
    %200 = arith.addf %198, %199 : vector<8x128xf32>
    %201 = math.tanh %200 : vector<8x128xf32>
    %202 = arith.mulf %197, %201 : vector<8x128xf32>
    %c5_i32 = arith.constant 5 : i32
    %c8_i32_74 = arith.constant 8 : i32
    %203 = arith.muli %c5_i32, %c8_i32_74 : i32
    %204 = tpu.assume_multiple %203, 8 : i32
    %205 = arith.index_cast %204 : i32 to index
    %c0_75 = arith.constant 0 : index
    %206 = vector.load %arg11[%205, %c0_75] : memref<64x512xf32, #tpu.memory_space<vmem>>, vector<8x512xf32>
    %207 = arith.truncf %202 : vector<8x128xf32> to vector<8x128xbf16>
    %cst_76 = arith.constant dense<0.000000e+00> : vector<8x512xf32>
    %208 = tpu.matmul %207, %10, %cst_76 {dimension_numbers = #tpu.dot_dimension_numbers<[1], [0], [0], [1], [0, 0, 1, 1], [], []>} : vector<8x128xbf16>, vector<128x512xbf16>, vector<8x512xf32> -> vector<8x512xf32>
    %209 = arith.addf %206, %208 : vector<8x512xf32>
    %210 = vector.extract_strided_slice %209 {offsets = [0, 0], sizes = [8, 128], strides = [1, 1]} : vector<8x512xf32> to vector<8x128xf32>
    %cst_77 = arith.constant 5.000000e-01 : f32
    %211 = vector.broadcast %cst_77 : f32 to vector<8x128xf32>
    %212 = arith.mulf %211, %210 : vector<8x128xf32>
    %213 = math.tanh %212 : vector<8x128xf32>
    %cst_78 = arith.constant 5.000000e-01 : f32
    %214 = vector.broadcast %cst_78 : f32 to vector<8x128xf32>
    %215 = arith.mulf %214, %213 : vector<8x128xf32>
    %cst_79 = arith.constant 5.000000e-01 : f32
    %216 = vector.broadcast %cst_79 : f32 to vector<8x128xf32>
    %217 = arith.addf %215, %216 : vector<8x128xf32>
    %218 = vector.extract_strided_slice %209 {offsets = [0, 128], sizes = [8, 128], strides = [1, 1]} : vector<8x512xf32> to vector<8x128xf32>
    %cst_80 = arith.constant 5.000000e-01 : f32
    %219 = vector.broadcast %cst_80 : f32 to vector<8x128xf32>
    %220 = arith.mulf %219, %218 : vector<8x128xf32>
    %221 = math.tanh %220 : vector<8x128xf32>
    %cst_81 = arith.constant 5.000000e-01 : f32
    %222 = vector.broadcast %cst_81 : f32 to vector<8x128xf32>
    %223 = arith.mulf %222, %221 : vector<8x128xf32>
    %cst_82 = arith.constant 5.000000e-01 : f32
    %224 = vector.broadcast %cst_82 : f32 to vector<8x128xf32>
    %225 = arith.addf %223, %224 : vector<8x128xf32>
    %226 = vector.extract_strided_slice %209 {offsets = [0, 256], sizes = [8, 128], strides = [1, 1]} : vector<8x512xf32> to vector<8x128xf32>
    %227 = math.tanh %226 : vector<8x128xf32>
    %228 = vector.extract_strided_slice %209 {offsets = [0, 384], sizes = [8, 128], strides = [1, 1]} : vector<8x512xf32> to vector<8x128xf32>
    %cst_83 = arith.constant 5.000000e-01 : f32
    %229 = vector.broadcast %cst_83 : f32 to vector<8x128xf32>
    %230 = arith.mulf %229, %228 : vector<8x128xf32>
    %231 = math.tanh %230 : vector<8x128xf32>
    %cst_84 = arith.constant 5.000000e-01 : f32
    %232 = vector.broadcast %cst_84 : f32 to vector<8x128xf32>
    %233 = arith.mulf %232, %231 : vector<8x128xf32>
    %cst_85 = arith.constant 5.000000e-01 : f32
    %234 = vector.broadcast %cst_85 : f32 to vector<8x128xf32>
    %235 = arith.addf %233, %234 : vector<8x128xf32>
    %236 = arith.mulf %225, %200 : vector<8x128xf32>
    %237 = arith.mulf %217, %227 : vector<8x128xf32>
    %238 = arith.addf %236, %237 : vector<8x128xf32>
    %239 = math.tanh %238 : vector<8x128xf32>
    %240 = arith.mulf %235, %239 : vector<8x128xf32>
    %c6_i32 = arith.constant 6 : i32
    %c8_i32_86 = arith.constant 8 : i32
    %241 = arith.muli %c6_i32, %c8_i32_86 : i32
    %242 = tpu.assume_multiple %241, 8 : i32
    %243 = arith.index_cast %242 : i32 to index
    %c0_87 = arith.constant 0 : index
    %244 = vector.load %arg11[%243, %c0_87] : memref<64x512xf32, #tpu.memory_space<vmem>>, vector<8x512xf32>
    %245 = arith.truncf %240 : vector<8x128xf32> to vector<8x128xbf16>
    %cst_88 = arith.constant dense<0.000000e+00> : vector<8x512xf32>
    %246 = tpu.matmul %245, %10, %cst_88 {dimension_numbers = #tpu.dot_dimension_numbers<[1], [0], [0], [1], [0, 0, 1, 1], [], []>} : vector<8x128xbf16>, vector<128x512xbf16>, vector<8x512xf32> -> vector<8x512xf32>
    %247 = arith.addf %244, %246 : vector<8x512xf32>
    %248 = vector.extract_strided_slice %247 {offsets = [0, 0], sizes = [8, 128], strides = [1, 1]} : vector<8x512xf32> to vector<8x128xf32>
    %cst_89 = arith.constant 5.000000e-01 : f32
    %249 = vector.broadcast %cst_89 : f32 to vector<8x128xf32>
    %250 = arith.mulf %249, %248 : vector<8x128xf32>
    %251 = math.tanh %250 : vector<8x128xf32>
    %cst_90 = arith.constant 5.000000e-01 : f32
    %252 = vector.broadcast %cst_90 : f32 to vector<8x128xf32>
    %253 = arith.mulf %252, %251 : vector<8x128xf32>
    %cst_91 = arith.constant 5.000000e-01 : f32
    %254 = vector.broadcast %cst_91 : f32 to vector<8x128xf32>
    %255 = arith.addf %253, %254 : vector<8x128xf32>
    %256 = vector.extract_strided_slice %247 {offsets = [0, 128], sizes = [8, 128], strides = [1, 1]} : vector<8x512xf32> to vector<8x128xf32>
    %cst_92 = arith.constant 5.000000e-01 : f32
    %257 = vector.broadcast %cst_92 : f32 to vector<8x128xf32>
    %258 = arith.mulf %257, %256 : vector<8x128xf32>
    %259 = math.tanh %258 : vector<8x128xf32>
    %cst_93 = arith.constant 5.000000e-01 : f32
    %260 = vector.broadcast %cst_93 : f32 to vector<8x128xf32>
    %261 = arith.mulf %260, %259 : vector<8x128xf32>
    %cst_94 = arith.constant 5.000000e-01 : f32
    %262 = vector.broadcast %cst_94 : f32 to vector<8x128xf32>
    %263 = arith.addf %261, %262 : vector<8x128xf32>
    %264 = vector.extract_strided_slice %247 {offsets = [0, 256], sizes = [8, 128], strides = [1, 1]} : vector<8x512xf32> to vector<8x128xf32>
    %265 = math.tanh %264 : vector<8x128xf32>
    %266 = vector.extract_strided_slice %247 {offsets = [0, 384], sizes = [8, 128], strides = [1, 1]} : vector<8x512xf32> to vector<8x128xf32>
    %cst_95 = arith.constant 5.000000e-01 : f32
    %267 = vector.broadcast %cst_95 : f32 to vector<8x128xf32>
    %268 = arith.mulf %267, %266 : vector<8x128xf32>
    %269 = math.tanh %268 : vector<8x128xf32>
    %cst_96 = arith.constant 5.000000e-01 : f32
    %270 = vector.broadcast %cst_96 : f32 to vector<8x128xf32>
    %271 = arith.mulf %270, %269 : vector<8x128xf32>
    %cst_97 = arith.constant 5.000000e-01 : f32
    %272 = vector.broadcast %cst_97 : f32 to vector<8x128xf32>
    %273 = arith.addf %271, %272 : vector<8x128xf32>
    %274 = arith.mulf %263, %238 : vector<8x128xf32>
    %275 = arith.mulf %255, %265 : vector<8x128xf32>
    %276 = arith.addf %274, %275 : vector<8x128xf32>
    %277 = math.tanh %276 : vector<8x128xf32>
    %278 = arith.mulf %273, %277 : vector<8x128xf32>
    %c7_i32 = arith.constant 7 : i32
    %c8_i32_98 = arith.constant 8 : i32
    %279 = arith.muli %c7_i32, %c8_i32_98 : i32
    %280 = tpu.assume_multiple %279, 8 : i32
    %281 = arith.index_cast %280 : i32 to index
    %c0_99 = arith.constant 0 : index
    %282 = vector.load %arg11[%281, %c0_99] : memref<64x512xf32, #tpu.memory_space<vmem>>, vector<8x512xf32>
    %283 = arith.truncf %278 : vector<8x128xf32> to vector<8x128xbf16>
    %cst_100 = arith.constant dense<0.000000e+00> : vector<8x512xf32>
    %284 = tpu.matmul %283, %10, %cst_100 {dimension_numbers = #tpu.dot_dimension_numbers<[1], [0], [0], [1], [0, 0, 1, 1], [], []>} : vector<8x128xbf16>, vector<128x512xbf16>, vector<8x512xf32> -> vector<8x512xf32>
    %285 = arith.addf %282, %284 : vector<8x512xf32>
    %286 = vector.extract_strided_slice %285 {offsets = [0, 0], sizes = [8, 128], strides = [1, 1]} : vector<8x512xf32> to vector<8x128xf32>
    %cst_101 = arith.constant 5.000000e-01 : f32
    %287 = vector.broadcast %cst_101 : f32 to vector<8x128xf32>
    %288 = arith.mulf %287, %286 : vector<8x128xf32>
    %289 = math.tanh %288 : vector<8x128xf32>
    %cst_102 = arith.constant 5.000000e-01 : f32
    %290 = vector.broadcast %cst_102 : f32 to vector<8x128xf32>
    %291 = arith.mulf %290, %289 : vector<8x128xf32>
    %cst_103 = arith.constant 5.000000e-01 : f32
    %292 = vector.broadcast %cst_103 : f32 to vector<8x128xf32>
    %293 = arith.addf %291, %292 : vector<8x128xf32>
    %294 = vector.extract_strided_slice %285 {offsets = [0, 128], sizes = [8, 128], strides = [1, 1]} : vector<8x512xf32> to vector<8x128xf32>
    %cst_104 = arith.constant 5.000000e-01 : f32
    %295 = vector.broadcast %cst_104 : f32 to vector<8x128xf32>
    %296 = arith.mulf %295, %294 : vector<8x128xf32>
    %297 = math.tanh %296 : vector<8x128xf32>
    %cst_105 = arith.constant 5.000000e-01 : f32
    %298 = vector.broadcast %cst_105 : f32 to vector<8x128xf32>
    %299 = arith.mulf %298, %297 : vector<8x128xf32>
    %cst_106 = arith.constant 5.000000e-01 : f32
    %300 = vector.broadcast %cst_106 : f32 to vector<8x128xf32>
    %301 = arith.addf %299, %300 : vector<8x128xf32>
    %302 = vector.extract_strided_slice %285 {offsets = [0, 256], sizes = [8, 128], strides = [1, 1]} : vector<8x512xf32> to vector<8x128xf32>
    %303 = math.tanh %302 : vector<8x128xf32>
    %304 = vector.extract_strided_slice %285 {offsets = [0, 384], sizes = [8, 128], strides = [1, 1]} : vector<8x512xf32> to vector<8x128xf32>
    %cst_107 = arith.constant 5.000000e-01 : f32
    %305 = vector.broadcast %cst_107 : f32 to vector<8x128xf32>
    %306 = arith.mulf %305, %304 : vector<8x128xf32>
    %307 = math.tanh %306 : vector<8x128xf32>
    %cst_108 = arith.constant 5.000000e-01 : f32
    %308 = vector.broadcast %cst_108 : f32 to vector<8x128xf32>
    %309 = arith.mulf %308, %307 : vector<8x128xf32>
    %cst_109 = arith.constant 5.000000e-01 : f32
    %310 = vector.broadcast %cst_109 : f32 to vector<8x128xf32>
    %311 = arith.addf %309, %310 : vector<8x128xf32>
    %312 = arith.mulf %301, %276 : vector<8x128xf32>
    %313 = arith.mulf %293, %303 : vector<8x128xf32>
    %314 = arith.addf %312, %313 : vector<8x128xf32>
    %315 = math.tanh %314 : vector<8x128xf32>
    %316 = arith.mulf %311, %315 : vector<8x128xf32>
    %c8_i32_110 = arith.constant 8 : i32
    %c0_111 = arith.constant 0 : index
    %c0_112 = arith.constant 0 : index
    %317 = vector.load %arg9[%c0_111, %c0_112] : memref<8x128xf32, #tpu.memory_space<vmem>>, vector<8x128xf32>
    tpu.vector_store %arg9[%c0_111, %c0_112], %316 {strides = array<i32>} : memref<8x128xf32, #tpu.memory_space<vmem>>, vector<8x128xf32>,
    %c0_113 = arith.constant 0 : index
    %c0_114 = arith.constant 0 : index
    %318 = vector.load %arg10[%c0_113, %c0_114] : memref<8x128xf32, #tpu.memory_space<vmem>>, vector<8x128xf32>
    tpu.vector_store %arg10[%c0_113, %c0_114], %314 {strides = array<i32>} : memref<8x128xf32, #tpu.memory_space<vmem>>, vector<8x128xf32>,
    %c0_i32_115 = arith.constant 0 : i32
    %319 = arith.cmpi eq, %arg1, %c0_i32_115 : i32
    %320 = arith.extui %319 : i1 to i32
    %c0_i32_116 = arith.constant 0 : i32
    %321 = arith.cmpi ne, %320, %c0_i32_116 : i32
    scf.if %321 {
      %322 = arith.truncf %316 : vector<8x128xf32> to vector<8x128xbf16>
      %c0_117 = arith.constant 0 : index
      %c0_118 = arith.constant 0 : index
      %323 = vector.load %arg6[%c0_117, %c0_118] : memref<128x128xbf16, #tpu.memory_space<vmem>>, vector<128x128xbf16>
      %cst_119 = arith.constant dense<0.000000e+00> : vector<8x128xf32>
      %324 = tpu.matmul %322, %323, %cst_119 {dimension_numbers = #tpu.dot_dimension_numbers<[1], [0], [0], [1], [0, 0, 1, 1], [], []>} : vector<8x128xbf16>, vector<128x128xbf16>, vector<8x128xf32> -> vector<8x128xf32>
      %c0_120 = arith.constant 0 : index
      %c0_121 = arith.constant 0 : index
      %325 = vector.load %arg7[%c0_120, %c0_121] : memref<1x128xf32, #tpu.memory_space<vmem>>, vector<1x128xf32>
      %326 = vector.broadcast %325 : vector<1x128xf32> to vector<8x128xf32>
      %327 = arith.addf %324, %326 : vector<8x128xf32>
      %c0_122 = arith.constant 0 : index
      %c0_123 = arith.constant 0 : index
      %328 = vector.load %arg8[%c0_122, %c0_123] : memref<8x128xf32, #tpu.memory_space<vmem>>, vector<8x128xf32>
      tpu.vector_store %arg8[%c0_122, %c0_123], %327 {strides = array<i32>} : memref<8x128xf32, #tpu.memory_space<vmem>>, vector<8x128xf32>,
    } else {
    }
    return
  }
  func.func @transform_0(%arg0: i32, %arg1: i32) -> (i32, i32) {
    %c1_i32 = arith.constant 1 : i32
    %0 = arith.muli %arg0, %c1_i32 : i32
    %1 = arith.addi %0, %arg1 : i32
    %c0_i32 = arith.constant 0 : i32
    %c0_i32_0 = arith.constant 0 : i32
    return %1, %c0_i32 : i32, i32
  }
  func.func @transform_1(%arg0: i32, %arg1: i32) -> (i32, i32) {
    %c0_i32 = arith.constant 0 : i32
    %c0_i32_0 = arith.constant 0 : i32
    %c0_i32_1 = arith.constant 0 : i32
    return %c0_i32, %c0_i32_0 : i32, i32
  }
  func.func @transform_2(%arg0: i32, %arg1: i32) -> (i32, i32) {
    %c0_i32 = arith.constant 0 : i32
    %c0_i32_0 = arith.constant 0 : i32
    %c0_i32_1 = arith.constant 0 : i32
    return %c0_i32, %c0_i32_0 : i32, i32
  }
  func.func @transform_3(%arg0: i32, %arg1: i32) -> (i32, i32) {
    %c0_i32 = arith.constant 0 : i32
    %c0_i32_0 = arith.constant 0 : i32
    %c0_i32_1 = arith.constant 0 : i32
    return %c0_i32, %c0_i32_0 : i32, i32
  }
  func.func @transform_4(%arg0: i32, %arg1: i32) -> (i32, i32) {
    %c0_i32 = arith.constant 0 : i32
    %c0_i32_0 = arith.constant 0 : i32
    %c0_i32_1 = arith.constant 0 : i32
    return %c0_i32, %c0_i32_0 : i32, i32
  }
  func.func @transform_5(%arg0: i32, %arg1: i32) -> (i32, i32) {
    %c0_i32 = arith.constant 0 : i32
    %c0_i32_0 = arith.constant 0 : i32
    %c0_i32_1 = arith.constant 0 : i32
    return %c0_i32, %c0_i32_0 : i32, i32
  }
  func.func @transform_6(%arg0: i32, %arg1: i32) -> (i32, i32) {
    %c0_i32 = arith.constant 0 : i32
    %c0_i32_0 = arith.constant 0 : i32
    return %arg0, %c0_i32 : i32, i32
  }
}

</mosaic_0001>

<llo_original>
// kernel: tpu_custom_call.1
$region0: #{tpu_custom_call.1}
  #allocation0 [shape = 'u32[]', space=smem, size = 0x4, offset = 0x4, fixed_abs, tag = 'smem constant byte address 0x4 - core index']
  #allocation1 [shape = 'u32[144,128]{1,0:T(1,128)}', space=vmem, size = 0x12000, scoped, tag = 'internal scratch']
  #allocation2 [shape = 'f32[8,128]{1,0:T(8,128)}', space=vmem, size = 0x1000, scoped, tag = 'scratch operand']
  #allocation3 [shape = 'f32[8,128]{1,0:T(8,128)}', space=vmem, size = 0x1000, scoped, tag = 'scratch operand']
  #allocation4 [shape = 'f32[64,512]{1,0:T(8,128)}', space=vmem, size = 0x20000, scoped, tag = 'scratch operand']
  %s0 = inlined_call_operand.vmem [shape: bf16[64,16], index: 0, kind: input, shape index: {}]
  %s1 = inlined_call_operand.vmem [shape: bf16[16,512], index: 1, kind: input, shape index: {}]
  %s2 = inlined_call_operand.hbm [shape: bf16[128,512], index: 2, kind: input, shape index: {}]
  %s3 = inlined_call_operand.vmem [shape: f32[1,512], index: 3, kind: input, shape index: {}]
  %s4 = inlined_call_operand.hbm [shape: bf16[128,128], index: 4, kind: input, shape index: {}]
  %s5 = inlined_call_operand.vmem [shape: f32[1,128], index: 5, kind: input, shape index: {}]
  %s6 = inlined_call_operand.hbm [shape: f32[8,128], index: 6, kind: output, shape index: {}]
  %s7 = sld [smem:[#allocation0]]
  $region50: #{tpu_custom_call.1} parent=0
    _
  %s9 = ssub.s32 1, %s7
  %s10 = scalar_select 0, %s9, %s7
  $region1: #{tpu_custom_call.1} parent=0
    #allocation5 [shape = 'u8[131072]{0}', space=vmem, size = 0x20000, scoped, tag = 'input window, operand 2, single buffered']
    #allocation6 [shape = 's32[1]{0}', space=sflag, size = 0x4, scoped, tag = 'scoped memory for tpu_custom_call.1']
    #allocation7 [shape = 's32[1]{0}', space=sflag, size = 0x4, scoped, tag = 'scoped memory for tpu_custom_call.1']
    #allocation8 [shape = 'u8[32768]{0}', space=vmem, size = 0x8000, scoped, tag = 'input window, operand 4, single buffered']
    #allocation9 [shape = 's32[1]{0}', space=sflag, size = 0x4, scoped, tag = 'scoped memory for tpu_custom_call.1']
    #allocation10 [shape = 'u8[4096]{0}', space=vmem, size = 0x1000, scoped, tag = 'output window, operand 0, single buffered']
    %11 = vsyncpa [#allocation6], 0
    %12 = vsyncpa [#allocation9], 0
    %13 = vsyncpa [#allocation7], 0
    // Predicated region
    $region2: #{tpu_custom_call.1} parent=1 // pred_check
      _
    $region3: #{tpu_custom_call.1} parent=1 // pred_check_branch
      %15 = sbr.rel (0) target = $region5
    $region4: #{tpu_custom_call.1} parent=1 // pred_region
      %s16 = sadd.s32 0, 0
      %s17 = smul.u32 8, %s16
      %p18 = scmp.lt.s32.totalorder %s17, 7
      %s19 = scalar_select %p18, %s17, 7
      %s20 = smul.addr %s19, 4
      %s21 = scalar_lea.vmem %s0, %s20
      %s22 = sadd.s32 0, 0
      %s23 = smul.u32 8, %s22
    $region5: #{tpu_custom_call.1} parent=1 // pred_fallthru
      _
    // Predicated region
    $region6: #{tpu_custom_call.1} parent=1 // pred_check
      _
    $region7: #{tpu_custom_call.1} parent=1 // pred_check_branch
      %25 = sbr.rel (0) target = $region9
    $region8: #{tpu_custom_call.1} parent=1 // pred_region
      _
    $region9: #{tpu_custom_call.1} parent=1 // pred_fallthru
      _
    // Predicated region
    $region10: #{tpu_custom_call.1} parent=1 // pred_check
      _
    $region11: #{tpu_custom_call.1} parent=1 // pred_check_branch
      %27 = sbr.rel (0) target = $region13
    $region12: #{tpu_custom_call.1} parent=1 // pred_region
      %s29 = ssub.s32 4096, 4096
      %30 = vsyncadd [#allocation6], %s29
      %s31 = sshll.u32 [#allocation5], 4
      %s32 = int_to_ptr.vmem [resolvable:$true] %s31
      %37 = dma.hbm_to_vmem [thread:$0]  %s2, 4096, %s32, [#allocation6], 256, 256, 16
    $region13: #{tpu_custom_call.1} parent=1 // pred_fallthru
      _
    // Predicated region
    $region14: #{tpu_custom_call.1} parent=1 // pred_check
      _
    $region15: #{tpu_custom_call.1} parent=1 // pred_check_branch
      %39 = sbr.rel (0) target = $region17
    $region16: #{tpu_custom_call.1} parent=1 // pred_region
      _
    $region17: #{tpu_custom_call.1} parent=1 // pred_fallthru
      _
    // Predicated region
    $region18: #{tpu_custom_call.1} parent=1 // pred_check
      _
    $region19: #{tpu_custom_call.1} parent=1 // pred_check_branch
      %41 = sbr.rel (0) target = $region21
    $region20: #{tpu_custom_call.1} parent=1 // pred_region
      %s43 = ssub.s32 1024, 1024
      %44 = vsyncadd [#allocation9], %s43
      %s45 = sshll.u32 [#allocation8], 4
      %s46 = int_to_ptr.vmem [resolvable:$true] %s45
      %51 = dma.hbm_to_vmem [thread:$0]  %s4, 1024, %s46, [#allocation9], 64, 64, 4
    $region21: #{tpu_custom_call.1} parent=1 // pred_fallthru
      _
    // Predicated region
    $region22: #{tpu_custom_call.1} parent=1 // pred_check
      _
    $region23: #{tpu_custom_call.1} parent=1 // pred_check_branch
      %53 = sbr.rel (0) target = $region25
    $region24: #{tpu_custom_call.1} parent=1 // pred_region
      _
    $region25: #{tpu_custom_call.1} parent=1 // pred_fallthru
      _
    // Predicated region
    $region26: #{tpu_custom_call.1} parent=1 // pred_check
      _
    $region27: #{tpu_custom_call.1} parent=1 // pred_check_branch
      %55 = sbr.rel (0) target = $region29
    $region28: #{tpu_custom_call.1} parent=1 // pred_region
      %56 = dma.done [#allocation6], 4096
    $region29: #{tpu_custom_call.1} parent=1 // pred_fallthru
      _
    // Predicated region
    $region30: #{tpu_custom_call.1} parent=1 // pred_check
      _
    $region31: #{tpu_custom_call.1} parent=1 // pred_check_branch
      %58 = sbr.rel (0) target = $region33
    $region32: #{tpu_custom_call.1} parent=1 // pred_region
      %59 = dma.done [#allocation9], 1024
    $region33: #{tpu_custom_call.1} parent=1 // pred_fallthru
      _
    %s60 = sadd.s32 0, 0
    %s61 = smul.u32 8, %s60
    %p62 = scmp.lt.s32.totalorder %s61, 7
    %s63 = scalar_select %p62, %s61, 7
    %s64 = smul.addr %s63, 4
    %s65 = scalar_lea.vmem %s0, %s64
    %s66 = sadd.s32 0, 0
    %s67 = smul.u32 8, %s66
    %p68 = scmp.lt.s32.totalorder %s67, 7
    %s69 = scalar_select %p68, %s67, 7
    %s70 = smul.addr %s69, 4
    %s71 = scalar_lea.vmem %s0, %s70
    %s72 = sadd.s32 0, 0
    %s73 = smul.u32 8, %s72
    %p75 = scmp.eq.s32.totalorder 0, 0
    // Predicated region
    $region34: #{tpu_custom_call.1} parent=1 // pred_check
      %p76 = pneg %p75
    $region35: #{tpu_custom_call.1} parent=1 // pred_check_branch
      %78 = sbr.rel (%p76) target = $region37
    $region36: #{tpu_custom_call.1} parent=1 // pred_region
      %79 = vst [vmem:[#allocation2] sm:$0xff] 0.0
      %80 = vst [vmem:[#allocation3] sm:$0xff] 0.0
    $region37: #{tpu_custom_call.1} parent=1 // pred_fallthru
      _
    %v81 = vld [vmem:[%s71] sm:$0xf]
    %v82 = vld [vmem:[%s71 + $0x4] sm:$0xf]
    %v83 = vld [vmem:[%s71 + $0x8] sm:$0xf]
    %v84 = vld [vmem:[%s71 + $0xc] sm:$0xf]
    %v85 = vld [vmem:[%s71 + $0x10] sm:$0xf]
    %v86 = vld [vmem:[%s71 + $0x14] sm:$0xf]
    %v87 = vld [vmem:[%s71 + $0x18] sm:$0xf]
    %v88 = vld [vmem:[%s71 + $0x1c] sm:$0xf]
    %v89 = vld [vmem:[%s1] sm:$0xff]
    %v90 = vld [vmem:[%s1 + $0x8] sm:$0xff]
    %v91 = vld [vmem:[%s1 + $0x10] sm:$0xff]
    %v92 = vld [vmem:[%s1 + $0x18] sm:$0xff]
    %v93 = vld [vmem:[%s3] sm:$0xf]
    %v95 = vlaneseq
    %v96 = vshrl.u32 %v95, 7
    %v97 = vsub.s32 0, %v96
    %v98 = vrot.slane %v93, %v97
    %v99 = vlaneseq
    %v100 = vshrl.u32 %v99, 7
    %v101 = vsub.s32 1, %v100
    %v102 = vrot.slane %v93, %v101
    %v103 = vlaneseq
    %v104 = vshrl.u32 %v103, 7
    %v105 = vsub.s32 2, %v104
    %v106 = vrot.slane %v93, %v105
    %v107 = vlaneseq
    %v108 = vshrl.u32 %v107, 7
    %v109 = vsub.s32 3, %v108
    %v110 = vrot.slane %v93, %v109
    %v123 = vunpack.c.l.b16 %v81
    %v124 = vunpack.c.l.b16 %v82
    %v125 = vunpack.c.l.b16 %v83
    %v126 = vunpack.c.l.b16 %v84
    %v127 = vunpack.c.l.b16 %v85
    %v128 = vunpack.c.l.b16 %v86
    %v129 = vunpack.c.l.b16 %v87
    %v130 = vunpack.c.l.b16 %v88
    %v131 = vpack.c.b16 %v124, %v123
    %v132 = vpack.c.b16 %v126, %v125
    %v133 = vpack.c.b16 %v128, %v127
    %v134 = vpack.c.b16 %v130, %v129
    %v139 = vunpack.c.l.b16 %v89
    %v140 = vunpack.c.h.b16 %v89
    %v141 = vunpack.c.l.b16 %v90
    %v142 = vunpack.c.h.b16 %v90
    %v143 = vunpack.c.l.b16 %v91
    %v144 = vunpack.c.h.b16 %v91
    %v145 = vunpack.c.l.b16 %v92
    %v146 = vunpack.c.h.b16 %v92
    %v147 = vpack.c.b16 %v143, %v139
    %v148 = vpack.c.b16 %v144, %v140
    %v149 = vpack.c.b16 %v145, %v141
    %v150 = vpack.c.b16 %v146, %v142
    %vm155 = vcmask 130048
    %v157 = vsel %vm155, %v131, 0
    %v160 = vsel %vm155, %v132, 0
    %v163 = vsel %vm155, %v133, 0
    %v166 = vsel %vm155, %v134, 0
    %168 = vmatprep.subr.bf16.mxu0 0
    %169 = vmatpush1.bf16.msra.mxu0 0
    %170 = vmatprep.subr.bf16.mxu0 0
    %171 = vmatpush1.bf16.msra.mxu0 0
    %172 = vmatprep.subr.bf16.mxu0 0
    %173 = vmatpush1.bf16.msra.mxu0 0
    %174 = vmatprep.subr.bf16.mxu0 0
    %175 = vmatpush1.bf16.msra.mxu0 0
    %176 = vmatprep.subr.bf16.mxu0 0
    %177 = vmatpush1.bf16.msra.mxu0 0
    %178 = vmatprep.subr.bf16.mxu0 0
    %179 = vmatpush1.bf16.msra.mxu0 0
    %180 = vmatprep.subr.bf16.mxu0 0
    %181 = vmatpush1.bf16.msra.mxu0 0
    %182 = vmatprep.subr.bf16.mxu0 %v148
    %183 = vmatpush1.bf16.msra.mxu0 %v147
    %184 = vmatprep.subr.bf16.mxu0 0
    %185 = vmatpush2.bf16.msra.mxu0 0
    %186 = vmatprep.subr.bf16.mxu0 0
    %187 = vmatpush2.bf16.msra.mxu0 0
    %188 = vmatprep.subr.bf16.mxu0 0
    %189 = vmatpush2.bf16.msra.mxu0 0
    %190 = vmatprep.subr.bf16.mxu0 0
    %191 = vmatpush2.bf16.msra.mxu0 0
    %192 = vmatprep.subr.bf16.mxu0 0
    %193 = vmatpush2.bf16.msra.mxu0 0
    %194 = vmatprep.subr.bf16.mxu0 0
    %195 = vmatpush2.bf16.msra.mxu0 0
    %196 = vmatprep.subr.bf16.mxu0 0
    %197 = vmatpush2.bf16.msra.mxu0 0
    %198 = vmatprep.subr.bf16.mxu0 0
    %199 = vmatpush2.bf16.msra.mxu0 0
    %200 = vmatprep.mubr.bf16.mxu0 0
    %201 = vmatmul.mubr.bf16.gmra.mxu0 %v157
    %v202 = vpop.f32.mrf.mxu0
    %v203 = vadd.f32 %v98, %v202
    %v204 = vpop.f32.mrf.mxu0
    %v205 = vadd.f32 %v102, %v204
    %v206 = vpop.f32.mrf.mxu0
    %v207 = vadd.f32 %v98, %v206
    %v208 = vpop.f32.mrf.mxu0
    %v209 = vadd.f32 %v102, %v208
    %210 = vmatprep.mubr.bf16.mxu0 0
    %211 = vmatmul.mubr.bf16.gmra.mxu0 %v160
    %v212 = vpop.f32.mrf.mxu0
    %v213 = vadd.f32 %v98, %v212
    %v214 = vpop.f32.mrf.mxu0
    %v215 = vadd.f32 %v102, %v214
    %v216 = vpop.f32.mrf.mxu0
    %v217 = vadd.f32 %v98, %v216
    %v218 = vpop.f32.mrf.mxu0
    %v219 = vadd.f32 %v102, %v218
    %220 = vmatprep.mubr.bf16.mxu0 0
    %221 = vmatmul.mubr.bf16.gmra.mxu0 %v163
    %v222 = vpop.f32.mrf.mxu0
    %v223 = vadd.f32 %v98, %v222
    %v224 = vpop.f32.mrf.mxu0
    %v225 = vadd.f32 %v102, %v224
    %v226 = vpop.f32.mrf.mxu0
    %v227 = vadd.f32 %v98, %v226
    %v228 = vpop.f32.mrf.mxu0
    %v229 = vadd.f32 %v102, %v228
    %230 = vmatprep.mubr.bf16.mxu0 0
    %231 = vmatmul.mubr.bf16.gmra.mxu0 %v166
    %v232 = vpop.f32.mrf.mxu0
    %v233 = vadd.f32 %v98, %v232
    %v234 = vpop.f32.mrf.mxu0
    %v235 = vadd.f32 %v102, %v234
    %v236 = vpop.f32.mrf.mxu0
    %v237 = vadd.f32 %v98, %v236
    %v238 = vpop.f32.mrf.mxu0
    %v239 = vadd.f32 %v102, %v238
    %240 = vdwg.mxu0
    %241 = vmatprep.subr.bf16.mxu0 0
    %242 = vmatpush1.bf16.msra.mxu0 0
    %243 = vmatprep.subr.bf16.mxu0 0
    %244 = vmatpush1.bf16.msra.mxu0 0
    %245 = vmatprep.subr.bf16.mxu0 0
    %246 = vmatpush1.bf16.msra.mxu0 0
    %247 = vmatprep.subr.bf16.mxu0 0
    %248 = vmatpush1.bf16.msra.mxu0 0
    %249 = vmatprep.subr.bf16.mxu0 0
    %250 = vmatpush1.bf16.msra.mxu0 0
    %251 = vmatprep.subr.bf16.mxu0 0
    %252 = vmatpush1.bf16.msra.mxu0 0
    %253 = vmatprep.subr.bf16.mxu0 0
    %254 = vmatpush1.bf16.msra.mxu0 0
    %255 = vmatprep.subr.bf16.mxu0 %v150
    %256 = vmatpush1.bf16.msra.mxu0 %v149
    %257 = vmatprep.subr.bf16.mxu0 0
    %258 = vmatpush2.bf16.msra.mxu0 0
    %259 = vmatprep.subr.bf16.mxu0 0
    %260 = vmatpush2.bf16.msra.mxu0 0
    %261 = vmatprep.subr.bf16.mxu0 0
    %262 = vmatpush2.bf16.msra.mxu0 0
    %263 = vmatprep.subr.bf16.mxu0 0
    %264 = vmatpush2.bf16.msra.mxu0 0
    %265 = vmatprep.subr.bf16.mxu0 0
    %266 = vmatpush2.bf16.msra.mxu0 0
    %267 = vmatprep.subr.bf16.mxu0 0
    %268 = vmatpush2.bf16.msra.mxu0 0
    %269 = vmatprep.subr.bf16.mxu0 0
    %270 = vmatpush2.bf16.msra.mxu0 0
    %271 = vmatprep.subr.bf16.mxu0 0
    %272 = vmatpush2.bf16.msra.mxu0 0
    %273 = vmatprep.mubr.bf16.mxu0 0
    %274 = vmatmul.mubr.bf16.gmra.mxu0 %v157
    %v275 = vpop.f32.mrf.mxu0
    %v276 = vadd.f32 %v106, %v275
    %v277 = vpop.f32.mrf.mxu0
    %v278 = vadd.f32 %v110, %v277
    %v279 = vpop.f32.mrf.mxu0
    %v280 = vadd.f32 %v106, %v279
    %v281 = vpop.f32.mrf.mxu0
    %v282 = vadd.f32 %v110, %v281
    %283 = vmatprep.mubr.bf16.mxu0 0
    %284 = vmatmul.mubr.bf16.gmra.mxu0 %v160
    %v285 = vpop.f32.mrf.mxu0
    %v286 = vadd.f32 %v106, %v285
    %v287 = vpop.f32.mrf.mxu0
    %v288 = vadd.f32 %v110, %v287
    %v289 = vpop.f32.mrf.mxu0
    %v290 = vadd.f32 %v106, %v289
    %v291 = vpop.f32.mrf.mxu0
    %v292 = vadd.f32 %v110, %v291
    %293 = vmatprep.mubr.bf16.mxu0 0
    %294 = vmatmul.mubr.bf16.gmra.mxu0 %v163
    %v295 = vpop.f32.mrf.mxu0
    %v296 = vadd.f32 %v106, %v295
    %v297 = vpop.f32.mrf.mxu0
    %v298 = vadd.f32 %v110, %v297
    %v299 = vpop.f32.mrf.mxu0
    %v300 = vadd.f32 %v106, %v299
    %v301 = vpop.f32.mrf.mxu0
    %v302 = vadd.f32 %v110, %v301
    %303 = vmatprep.mubr.bf16.mxu0 0
    %304 = vmatmul.mubr.bf16.gmra.mxu0 %v166
    %v305 = vpop.f32.mrf.mxu0
    %v306 = vadd.f32 %v106, %v305
    %v307 = vpop.f32.mrf.mxu0
    %v308 = vadd.f32 %v110, %v307
    %v309 = vpop.f32.mrf.mxu0
    %v310 = vadd.f32 %v106, %v309
    %v311 = vpop.f32.mrf.mxu0
    %v312 = vadd.f32 %v110, %v311
    %313 = vdwg.mxu0
    %314 = vst [vmem:[#allocation4] sm:$0xff] %v203
    %315 = vst [vmem:[#allocation4 + $0x8] sm:$0xff] %v205
    %316 = vst [vmem:[#allocation4 + $0x10] sm:$0xff] %v276
    %317 = vst [vmem:[#allocation4 + $0x18] sm:$0xff] %v278
    %318 = vst [vmem:[#allocation4 + $0x20] sm:$0xff] %v207
    %319 = vst [vmem:[#allocation4 + $0x28] sm:$0xff] %v209
    %320 = vst [vmem:[#allocation4 + $0x30] sm:$0xff] %v280
    %321 = vst [vmem:[#allocation4 + $0x38] sm:$0xff] %v282
    %322 = vst [vmem:[#allocation4 + $0x40] sm:$0xff] %v213
    %323 = vst [vmem:[#allocation4 + $0x48] sm:$0xff] %v215
    %324 = vst [vmem:[#allocation4 + $0x50] sm:$0xff] %v286
    %325 = vst [vmem:[#allocation4 + $0x58] sm:$0xff] %v288
    %326 = vst [vmem:[#allocation4 + $0x60] sm:$0xff] %v217
    %327 = vst [vmem:[#allocation4 + $0x68] sm:$0xff] %v219
    %328 = vst [vmem:[#allocation4 + $0x70] sm:$0xff] %v290
    %329 = vst [vmem:[#allocation4 + $0x78] sm:$0xff] %v292
    %330 = vst [vmem:[#allocation4 + $0x80] sm:$0xff] %v223
    %331 = vst [vmem:[#allocation4 + $0x88] sm:$0xff] %v225
    %332 = vst [vmem:[#allocation4 + $0x90] sm:$0xff] %v296
    %333 = vst [vmem:[#allocation4 + $0x98] sm:$0xff] %v298
    %334 = vst [vmem:[#allocation4 + $0xa0] sm:$0xff] %v227
    %335 = vst [vmem:[#allocation4 + $0xa8] sm:$0xff] %v229
    %336 = vst [vmem:[#allocation4 + $0xb0] sm:$0xff] %v300
    %337 = vst [vmem:[#allocation4 + $0xb8] sm:$0xff] %v302
    %338 = vst [vmem:[#allocation4 + $0xc0] sm:$0xff] %v233
    %339 = vst [vmem:[#allocation4 + $0xc8] sm:$0xff] %v235
    %340 = vst [vmem:[#allocation4 + $0xd0] sm:$0xff] %v306
    %341 = vst [vmem:[#allocation4 + $0xd8] sm:$0xff] %v308
    %342 = vst [vmem:[#allocation4 + $0xe0] sm:$0xff] %v237
    %343 = vst [vmem:[#allocation4 + $0xe8] sm:$0xff] %v239
    %344 = vst [vmem:[#allocation4 + $0xf0] sm:$0xff] %v310
    %345 = vst [vmem:[#allocation4 + $0xf8] sm:$0xff] %v312
    %v346 = vld [vmem:[#allocation5] sm:$0xff]
    %v347 = vld [vmem:[#allocation5 + $0x8] sm:$0xff]
    %v348 = vld [vmem:[#allocation5 + $0x10] sm:$0xff]
    %v349 = vld [vmem:[#allocation5 + $0x18] sm:$0xff]
    %v350 = vld [vmem:[#allocation5 + $0x20] sm:$0xff]
    %v351 = vld [vmem:[#allocation5 + $0x28] sm:$0xff]
    %v352 = vld [vmem:[#allocation5 + $0x30] sm:$0xff]
    %v353 = vld [vmem:[#allocation5 + $0x38] sm:$0xff]
    %v354 = vld [vmem:[#allocation5 + $0x40] sm:$0xff]
    %v355 = vld [vmem:[#allocation5 + $0x48] sm:$0xff]
    %v356 = vld [vmem:[#allocation5 + $0x50] sm:$0xff]
    %v357 = vld [vmem:[#allocation5 + $0x58] sm:$0xff]
    %v358 = vld [vmem:[#allocation5 + $0x60] sm:$0xff]
    %v359 = vld [vmem:[#allocation5 + $0x68] sm:$0xff]
    %v360 = vld [vmem:[#allocation5 + $0x70] sm:$0xff]
    %v361 = vld [vmem:[#allocation5 + $0x78] sm:$0xff]
    %v362 = vld [vmem:[#allocation5 + $0x80] sm:$0xff]
    %v363 = vld [vmem:[#allocation5 + $0x88] sm:$0xff]
    %v364 = vld [vmem:[#allocation5 + $0x90] sm:$0xff]
    %v365 = vld [vmem:[#allocation5 + $0x98] sm:$0xff]
    %v366 = vld [vmem:[#allocation5 + $0xa0] sm:$0xff]
    %v367 = vld [vmem:[#allocation5 + $0xa8] sm:$0xff]
    %v368 = vld [vmem:[#allocation5 + $0xb0] sm:$0xff]
    %v369 = vld [vmem:[#allocation5 + $0xb8] sm:$0xff]
    %v370 = vld [vmem:[#allocation5 + $0xc0] sm:$0xff]
    %v371 = vld [vmem:[#allocation5 + $0xc8] sm:$0xff]
    %v372 = vld [vmem:[#allocation5 + $0xd0] sm:$0xff]
    %v373 = vld [vmem:[#allocation5 + $0xd8] sm:$0xff]
    %v374 = vld [vmem:[#allocation5 + $0xe0] sm:$0xff]
    %v375 = vld [vmem:[#allocation5 + $0xe8] sm:$0xff]
    %v376 = vld [vmem:[#allocation5 + $0xf0] sm:$0xff]
    %v377 = vld [vmem:[#allocation5 + $0xf8] sm:$0xff]
    %v378 = vld [vmem:[#allocation2] sm:$0xff]
    %v379 = vld [vmem:[#allocation3] sm:$0xff]
    %s380 = smul.u32 0, 4
    %s381 = smul.addr %s380, 8
    %s382 = scalar_lea.vmem [#allocation4], %s381
    %v383 = vld [vmem:[%s382] sm:$0xff]
    %v384 = vld [vmem:[%s382 + $0x8] sm:$0xff]
    %v385 = vld [vmem:[%s382 + $0x10] sm:$0xff]
    %v386 = vld [vmem:[%s382 + $0x18] sm:$0xff]
    %v387 = vpack.c.bf16 %v378, %v378
    %v420 = vunpack.c.l.b16 %v346
    %v421 = vunpack.c.h.b16 %v346
    %v422 = vunpack.c.l.b16 %v347
    %v423 = vunpack.c.h.b16 %v347
    %v424 = vunpack.c.l.b16 %v348
    %v425 = vunpack.c.h.b16 %v348
    %v426 = vunpack.c.l.b16 %v349
    %v427 = vunpack.c.h.b16 %v349
    %v428 = vunpack.c.l.b16 %v350
    %v429 = vunpack.c.h.b16 %v350
    %v430 = vunpack.c.l.b16 %v351
    %v431 = vunpack.c.h.b16 %v351
    %v432 = vunpack.c.l.b16 %v352
    %v433 = vunpack.c.h.b16 %v352
    %v434 = vunpack.c.l.b16 %v353
    %v435 = vunpack.c.h.b16 %v353
    %v436 = vunpack.c.l.b16 %v354
    %v437 = vunpack.c.h.b16 %v354
    %v438 = vunpack.c.l.b16 %v355
    %v439 = vunpack.c.h.b16 %v355
    %v440 = vunpack.c.l.b16 %v356
    %v441 = vunpack.c.h.b16 %v356
    %v442 = vunpack.c.l.b16 %v357
    %v443 = vunpack.c.h.b16 %v357
    %v444 = vunpack.c.l.b16 %v358
    %v445 = vunpack.c.h.b16 %v358
    %v446 = vunpack.c.l.b16 %v359
    %v447 = vunpack.c.h.b16 %v359
    %v448 = vunpack.c.l.b16 %v360
    %v449 = vunpack.c.h.b16 %v360
    %v450 = vunpack.c.l.b16 %v361
    %v451 = vunpack.c.h.b16 %v361
    %v452 = vunpack.c.l.b16 %v362
    %v453 = vunpack.c.h.b16 %v362
    %v454 = vunpack.c.l.b16 %v363
    %v455 = vunpack.c.h.b16 %v363
    %v456 = vunpack.c.l.b16 %v364
    %v457 = vunpack.c.h.b16 %v364
    %v458 = vunpack.c.l.b16 %v365
    %v459 = vunpack.c.h.b16 %v365
    %v460 = vunpack.c.l.b16 %v366
    %v461 = vunpack.c.h.b16 %v366
    %v462 = vunpack.c.l.b16 %v367
    %v463 = vunpack.c.h.b16 %v367
    %v464 = vunpack.c.l.b16 %v368
    %v465 = vunpack.c.h.b16 %v368
    %v466 = vunpack.c.l.b16 %v369
    %v467 = vunpack.c.h.b16 %v369
    %v468 = vunpack.c.l.b16 %v370
    %v469 = vunpack.c.h.b16 %v370
    %v470 = vunpack.c.l.b16 %v371
    %v471 = vunpack.c.h.b16 %v371
    %v472 = vunpack.c.l.b16 %v372
    %v473 = vunpack.c.h.b16 %v372
    %v474 = vunpack.c.l.b16 %v373
    %v475 = vunpack.c.h.b16 %v373
    %v476 = vunpack.c.l.b16 %v374
    %v477 = vunpack.c.h.b16 %v374
    %v478 = vunpack.c.l.b16 %v375
    %v479 = vunpack.c.h.b16 %v375
    %v480 = vunpack.c.l.b16 %v376
    %v481 = vunpack.c.h.b16 %v376
    %v482 = vunpack.c.l.b16 %v377
    %v483 = vunpack.c.h.b16 %v377
    %v484 = vpack.c.b16 %v424, %v420
    %v485 = vpack.c.b16 %v425, %v421
    %v486 = vpack.c.b16 %v426, %v422
    %v487 = vpack.c.b16 %v427, %v423
    %v488 = vpack.c.b16 %v432, %v428
    %v489 = vpack.c.b16 %v433, %v429
    %v490 = vpack.c.b16 %v434, %v430
    %v491 = vpack.c.b16 %v435, %v431
    %v492 = vpack.c.b16 %v440, %v436
    %v493 = vpack.c.b16 %v441, %v437
    %v494 = vpack.c.b16 %v442, %v438
    %v495 = vpack.c.b16 %v443, %v439
    %v496 = vpack.c.b16 %v448, %v444
    %v497 = vpack.c.b16 %v449, %v445
    %v498 = vpack.c.b16 %v450, %v446
    %v499 = vpack.c.b16 %v451, %v447
    %v500 = vpack.c.b16 %v456, %v452
    %v501 = vpack.c.b16 %v457, %v453
    %v502 = vpack.c.b16 %v458, %v454
    %v503 = vpack.c.b16 %v459, %v455
    %v504 = vpack.c.b16 %v464, %v460
    %v505 = vpack.c.b16 %v465, %v461
    %v506 = vpack.c.b16 %v466, %v462
    %v507 = vpack.c.b16 %v467, %v463
    %v508 = vpack.c.b16 %v472, %v468
    %v509 = vpack.c.b16 %v473, %v469
    %v510 = vpack.c.b16 %v474, %v470
    %v511 = vpack.c.b16 %v475, %v471
    %v512 = vpack.c.b16 %v480, %v476
    %v513 = vpack.c.b16 %v481, %v477
    %v514 = vpack.c.b16 %v482, %v478
    %v515 = vpack.c.b16 %v483, %v479
    %548 = vmatprep.subr.bf16.mxu0 %v513
    %549 = vmatpush1.bf16.msra.mxu0 %v512
    %550 = vmatprep.subr.bf16.mxu0 %v509
    %551 = vmatpush1.bf16.msra.mxu0 %v508
    %552 = vmatprep.subr.bf16.mxu0 %v505
    %553 = vmatpush1.bf16.msra.mxu0 %v504
    %554 = vmatprep.subr.bf16.mxu0 %v501
    %555 = vmatpush1.bf16.msra.mxu0 %v500
    %556 = vmatprep.subr.bf16.mxu0 %v497
    %557 = vmatpush1.bf16.msra.mxu0 %v496
    %558 = vmatprep.subr.bf16.mxu0 %v493
    %559 = vmatpush1.bf16.msra.mxu0 %v492
    %560 = vmatprep.subr.bf16.mxu0 %v489
    %561 = vmatpush1.bf16.msra.mxu0 %v488
    %562 = vmatprep.subr.bf16.mxu0 %v485
    %563 = vmatpush1.bf16.msra.mxu0 %v484
    %564 = vmatprep.subr.bf16.mxu0 0
    %565 = vmatpush2.bf16.msra.mxu0 0
    %566 = vmatprep.subr.bf16.mxu0 0
    %567 = vmatpush2.bf16.msra.mxu0 0
    %568 = vmatprep.subr.bf16.mxu0 0
    %569 = vmatpush2.bf16.msra.mxu0 0
    %570 = vmatprep.subr.bf16.mxu0 0
    %571 = vmatpush2.bf16.msra.mxu0 0
    %572 = vmatprep.subr.bf16.mxu0 0
    %573 = vmatpush2.bf16.msra.mxu0 0
    %574 = vmatprep.subr.bf16.mxu0 0
    %575 = vmatpush2.bf16.msra.mxu0 0
    %576 = vmatprep.subr.bf16.mxu0 0
    %577 = vmatpush2.bf16.msra.mxu0 0
    %578 = vmatprep.subr.bf16.mxu0 0
    %579 = vmatpush2.bf16.msra.mxu0 0
    %580 = vmatprep.mubr.bf16.mxu0 0
    %581 = vmatmul.mubr.bf16.gmra.mxu0 %v387
    %v582 = vpop.f32.mrf.mxu0
    %v583 = vadd.f32 0.0, %v582
    %v584 = vpop.f32.mrf.mxu0
    %v585 = vadd.f32 0.0, %v584
    %v586 = vpop.f32.mrf.mxu0
    %v587 = vpop.f32.mrf.mxu0
    %588 = vdwg.mxu0
    %589 = vmatprep.subr.bf16.mxu0 %v515
    %590 = vmatpush1.bf16.msra.mxu0 %v514
    %591 = vmatprep.subr.bf16.mxu0 %v511
    %592 = vmatpush1.bf16.msra.mxu0 %v510
    %593 = vmatprep.subr.bf16.mxu0 %v507
    %594 = vmatpush1.bf16.msra.mxu0 %v506
    %595 = vmatprep.subr.bf16.mxu0 %v503
    %596 = vmatpush1.bf16.msra.mxu0 %v502
    %597 = vmatprep.subr.bf16.mxu0 %v499
    %598 = vmatpush1.bf16.msra.mxu0 %v498
    %599 = vmatprep.subr.bf16.mxu0 %v495
    %600 = vmatpush1.bf16.msra.mxu0 %v494
    %601 = vmatprep.subr.bf16.mxu0 %v491
    %602 = vmatpush1.bf16.msra.mxu0 %v490
    %603 = vmatprep.subr.bf16.mxu0 %v487
    %604 = vmatpush1.bf16.msra.mxu0 %v486
    %605 = vmatprep.subr.bf16.mxu0 0
    %606 = vmatpush2.bf16.msra.mxu0 0
    %607 = vmatprep.subr.bf16.mxu0 0
    %608 = vmatpush2.bf16.msra.mxu0 0
    %609 = vmatprep.subr.bf16.mxu0 0
    %610 = vmatpush2.bf16.msra.mxu0 0
    %611 = vmatprep.subr.bf16.mxu0 0
    %612 = vmatpush2.bf16.msra.mxu0 0
    %613 = vmatprep.subr.bf16.mxu0 0
    %614 = vmatpush2.bf16.msra.mxu0 0
    %615 = vmatprep.subr.bf16.mxu0 0
    %616 = vmatpush2.bf16.msra.mxu0 0
    %617 = vmatprep.subr.bf16.mxu0 0
    %618 = vmatpush2.bf16.msra.mxu0 0
    %619 = vmatprep.subr.bf16.mxu0 0
    %620 = vmatpush2.bf16.msra.mxu0 0
    %621 = vmatprep.mubr.bf16.mxu0 0
    %622 = vmatmul.mubr.bf16.gmra.mxu0 %v387
    %v623 = vpop.f32.mrf.mxu0
    %v624 = vadd.f32 0.0, %v623
    %v625 = vpop.f32.mrf.mxu0
    %v626 = vadd.f32 0.0, %v625
    %v627 = vpop.f32.mrf.mxu0
    %v628 = vpop.f32.mrf.mxu0
    %629 = vdwg.mxu0
    %v630 = vadd.f32 %v383, %v583
    %v631 = vadd.f32 %v384, %v585
    %v632 = vadd.f32 %v385, %v624
    %v633 = vadd.f32 %v386, %v626
    %v634 = vmul.f32 %v630, 0.5
    %v635 = vtanh.pop %v634
    %v636 = vmul.f32 %v635, 0.5
    %v637 = vadd.f32 %v636, 0.5
    %v638 = vmul.f32 %v631, 0.5
    %v639 = vtanh.pop %v638
    %v640 = vmul.f32 %v639, 0.5
    %v641 = vadd.f32 %v640, 0.5
    %v642 = vtanh.pop %v632
    %v643 = vmul.f32 %v633, 0.5
    %v644 = vtanh.pop %v643
    %v645 = vmul.f32 %v644, 0.5
    %v646 = vadd.f32 %v645, 0.5
    %v647 = vmul.f32 %v641, %v379
    %v648 = vmul.f32 %v637, %v642
    %v649 = vadd.f32 %v647, %v648
    %v650 = vtanh.pop %v649
    %v651 = vmul.f32 %v646, %v650
    %s652 = smul.u32 1, 4
    %s653 = smul.addr %s652, 8
    %s654 = scalar_lea.vmem [#allocation4], %s653
    %v655 = vld [vmem:[%s654] sm:$0xff]
    %v656 = vld [vmem:[%s654 + $0x8] sm:$0xff]
    %v657 = vld [vmem:[%s654 + $0x10] sm:$0xff]
    %v658 = vld [vmem:[%s654 + $0x18] sm:$0xff]
    %v659 = vpack.c.bf16 %v651, %v651
    %660 = vmatprep.subr.bf16.mxu0 %v513
    %661 = vmatpush1.bf16.msra.mxu0 %v512
    %662 = vmatprep.subr.bf16.mxu0 %v509
    %663 = vmatpush1.bf16.msra.mxu0 %v508
    %664 = vmatprep.subr.bf16.mxu0 %v505
    %665 = vmatpush1.bf16.msra.mxu0 %v504
    %666 = vmatprep.subr.bf16.mxu0 %v501
    %667 = vmatpush1.bf16.msra.mxu0 %v500
    %668 = vmatprep.subr.bf16.mxu0 %v497
    %669 = vmatpush1.bf16.msra.mxu0 %v496
    %670 = vmatprep.subr.bf16.mxu0 %v493
    %671 = vmatpush1.bf16.msra.mxu0 %v492
    %672 = vmatprep.subr.bf16.mxu0 %v489
    %673 = vmatpush1.bf16.msra.mxu0 %v488
    %674 = vmatprep.subr.bf16.mxu0 %v485
    %675 = vmatpush1.bf16.msra.mxu0 %v484
    %676 = vmatprep.subr.bf16.mxu0 0
    %677 = vmatpush2.bf16.msra.mxu0 0
    %678 = vmatprep.subr.bf16.mxu0 0
    %679 = vmatpush2.bf16.msra.mxu0 0
    %680 = vmatprep.subr.bf16.mxu0 0
    %681 = vmatpush2.bf16.msra.mxu0 0
    %682 = vmatprep.subr.bf16.mxu0 0
    %683 = vmatpush2.bf16.msra.mxu0 0
    %684 = vmatprep.subr.bf16.mxu0 0
    %685 = vmatpush2.bf16.msra.mxu0 0
    %686 = vmatprep.subr.bf16.mxu0 0
    %687 = vmatpush2.bf16.msra.mxu0 0
    %688 = vmatprep.subr.bf16.mxu0 0
    %689 = vmatpush2.bf16.msra.mxu0 0
    %690 = vmatprep.subr.bf16.mxu0 0
    %691 = vmatpush2.bf16.msra.mxu0 0
    %692 = vmatprep.mubr.bf16.mxu0 0
    %693 = vmatmul.mubr.bf16.gmra.mxu0 %v659
    %v694 = vpop.f32.mrf.mxu0
    %v695 = vadd.f32 0.0, %v694
    %v696 = vpop.f32.mrf.mxu0
    %v697 = vadd.f32 0.0, %v696
    %v698 = vpop.f32.mrf.mxu0
    %v699 = vpop.f32.mrf.mxu0
    %700 = vdwg.mxu0
    %701 = vmatprep.subr.bf16.mxu0 %v515
    %702 = vmatpush1.bf16.msra.mxu0 %v514
    %703 = vmatprep.subr.bf16.mxu0 %v511
    %704 = vmatpush1.bf16.msra.mxu0 %v510
    %705 = vmatprep.subr.bf16.mxu0 %v507
    %706 = vmatpush1.bf16.msra.mxu0 %v506
    %707 = vmatprep.subr.bf16.mxu0 %v503
    %708 = vmatpush1.bf16.msra.mxu0 %v502
    %709 = vmatprep.subr.bf16.mxu0 %v499
    %710 = vmatpush1.bf16.msra.mxu0 %v498
    %711 = vmatprep.subr.bf16.mxu0 %v495
    %712 = vmatpush1.bf16.msra.mxu0 %v494
    %713 = vmatprep.subr.bf16.mxu0 %v491
    %714 = vmatpush1.bf16.msra.mxu0 %v490
    %715 = vmatprep.subr.bf16.mxu0 %v487
    %716 = vmatpush1.bf16.msra.mxu0 %v486
    %717 = vmatprep.subr.bf16.mxu0 0
    %718 = vmatpush2.bf16.msra.mxu0 0
    %719 = vmatprep.subr.bf16.mxu0 0
    %720 = vmatpush2.bf16.msra.mxu0 0
    %721 = vmatprep.subr.bf16.mxu0 0
    %722 = vmatpush2.bf16.msra.mxu0 0
    %723 = vmatprep.subr.bf16.mxu0 0
    %724 = vmatpush2.bf16.msra.mxu0 0
    %725 = vmatprep.subr.bf16.mxu0 0
    %726 = vmatpush2.bf16.msra.mxu0 0
    %727 = vmatprep.subr.bf16.mxu0 0
    %728 = vmatpush2.bf16.msra.mxu0 0
    %729 = vmatprep.subr.bf16.mxu0 0
    %730 = vmatpush2.bf16.msra.mxu0 0
    %731 = vmatprep.subr.bf16.mxu0 0
    %732 = vmatpush2.bf16.msra.mxu0 0
    %733 = vmatprep.mubr.bf16.mxu0 0
    %734 = vmatmul.mubr.bf16.gmra.mxu0 %v659
    %v735 = vpop.f32.mrf.mxu0
    %v736 = vadd.f32 0.0, %v735
    %v737 = vpop.f32.mrf.mxu0
    %v738 = vadd.f32 0.0, %v737
    %v739 = vpop.f32.mrf.mxu0
    %v740 = vpop.f32.mrf.mxu0
    %741 = vdwg.mxu0
    %v742 = vadd.f32 %v655, %v695
    %v743 = vadd.f32 %v656, %v697
    %v744 = vadd.f32 %v657, %v736
    %v745 = vadd.f32 %v658, %v738
    %v746 = vmul.f32 %v742, 0.5
    %v747 = vtanh.pop %v746
    %v748 = vmul.f32 %v747, 0.5
    %v749 = vadd.f32 %v748, 0.5
    %v750 = vmul.f32 %v743, 0.5
    %v751 = vtanh.pop %v750
    %v752 = vmul.f32 %v751, 0.5
    %v753 = vadd.f32 %v752, 0.5
    %v754 = vtanh.pop %v744
    %v755 = vmul.f32 %v745, 0.5
    %v756 = vtanh.pop %v755
    %v757 = vmul.f32 %v756, 0.5
    %v758 = vadd.f32 %v757, 0.5
    %v759 = vmul.f32 %v753, %v649
    %v760 = vmul.f32 %v749, %v754
    %v761 = vadd.f32 %v759, %v760
    %v762 = vtanh.pop %v761
    %v763 = vmul.f32 %v758, %v762
    %s764 = smul.u32 2, 4
    %s765 = smul.addr %s764, 8
    %s766 = scalar_lea.vmem [#allocation4], %s765
    %v767 = vld [vmem:[%s766] sm:$0xff]
    %v768 = vld [vmem:[%s766 + $0x8] sm:$0xff]
    %v769 = vld [vmem:[%s766 + $0x10] sm:$0xff]
    %v770 = vld [vmem:[%s766 + $0x18] sm:$0xff]
    %v771 = vpack.c.bf16 %v763, %v763
    %772 = vmatprep.subr.bf16.mxu0 %v513
    %773 = vmatpush1.bf16.msra.mxu0 %v512
    %774 = vmatprep.subr.bf16.mxu0 %v509
    %775 = vmatpush1.bf16.msra.mxu0 %v508
    %776 = vmatprep.subr.bf16.mxu0 %v505
    %777 = vmatpush1.bf16.msra.mxu0 %v504
    %778 = vmatprep.subr.bf16.mxu0 %v501
    %779 = vmatpush1.bf16.msra.mxu0 %v500
    %780 = vmatprep.subr.bf16.mxu0 %v497
    %781 = vmatpush1.bf16.msra.mxu0 %v496
    %782 = vmatprep.subr.bf16.mxu0 %v493
    %783 = vmatpush1.bf16.msra.mxu0 %v492
    %784 = vmatprep.subr.bf16.mxu0 %v489
    %785 = vmatpush1.bf16.msra.mxu0 %v488
    %786 = vmatprep.subr.bf16.mxu0 %v485
    %787 = vmatpush1.bf16.msra.mxu0 %v484
    %788 = vmatprep.subr.bf16.mxu0 0
    %789 = vmatpush2.bf16.msra.mxu0 0
    %790 = vmatprep.subr.bf16.mxu0 0
    %791 = vmatpush2.bf16.msra.mxu0 0
    %792 = vmatprep.subr.bf16.mxu0 0
    %793 = vmatpush2.bf16.msra.mxu0 0
    %794 = vmatprep.subr.bf16.mxu0 0
    %795 = vmatpush2.bf16.msra.mxu0 0
    %796 = vmatprep.subr.bf16.mxu0 0
    %797 = vmatpush2.bf16.msra.mxu0 0
    %798 = vmatprep.subr.bf16.mxu0 0
    %799 = vmatpush2.bf16.msra.mxu0 0
    %800 = vmatprep.subr.bf16.mxu0 0
    %801 = vmatpush2.bf16.msra.mxu0 0
    %802 = vmatprep.subr.bf16.mxu0 0
    %803 = vmatpush2.bf16.msra.mxu0 0
    %804 = vmatprep.mubr.bf16.mxu0 0
    %805 = vmatmul.mubr.bf16.gmra.mxu0 %v771
    %v806 = vpop.f32.mrf.mxu0
    %v807 = vadd.f32 0.0, %v806
    %v808 = vpop.f32.mrf.mxu0
    %v809 = vadd.f32 0.0, %v808
    %v810 = vpop.f32.mrf.mxu0
    %v811 = vpop.f32.mrf.mxu0
    %812 = vdwg.mxu0
    %813 = vmatprep.subr.bf16.mxu0 %v515
    %814 = vmatpush1.bf16.msra.mxu0 %v514
    %815 = vmatprep.subr.bf16.mxu0 %v511
    %816 = vmatpush1.bf16.msra.mxu0 %v510
    %817 = vmatprep.subr.bf16.mxu0 %v507
    %818 = vmatpush1.bf16.msra.mxu0 %v506
    %819 = vmatprep.subr.bf16.mxu0 %v503
    %820 = vmatpush1.bf16.msra.mxu0 %v502
    %821 = vmatprep.subr.bf16.mxu0 %v499
    %822 = vmatpush1.bf16.msra.mxu0 %v498
    %823 = vmatprep.subr.bf16.mxu0 %v495
    %824 = vmatpush1.bf16.msra.mxu0 %v494
    %825 = vmatprep.subr.bf16.mxu0 %v491
    %826 = vmatpush1.bf16.msra.mxu0 %v490
    %827 = vmatprep.subr.bf16.mxu0 %v487
    %828 = vmatpush1.bf16.msra.mxu0 %v486
    %829 = vmatprep.subr.bf16.mxu0 0
    %830 = vmatpush2.bf16.msra.mxu0 0
    %831 = vmatprep.subr.bf16.mxu0 0
    %832 = vmatpush2.bf16.msra.mxu0 0
    %833 = vmatprep.subr.bf16.mxu0 0
    %834 = vmatpush2.bf16.msra.mxu0 0
    %835 = vmatprep.subr.bf16.mxu0 0
    %836 = vmatpush2.bf16.msra.mxu0 0
    %837 = vmatprep.subr.bf16.mxu0 0
    %838 = vmatpush2.bf16.msra.mxu0 0
    %839 = vmatprep.subr.bf16.mxu0 0
    %840 = vmatpush2.bf16.msra.mxu0 0
    %841 = vmatprep.subr.bf16.mxu0 0
    %842 = vmatpush2.bf16.msra.mxu0 0
    %843 = vmatprep.subr.bf16.mxu0 0
    %844 = vmatpush2.bf16.msra.mxu0 0
    %845 = vmatprep.mubr.bf16.mxu0 0
    %846 = vmatmul.mubr.bf16.gmra.mxu0 %v771
    %v847 = vpop.f32.mrf.mxu0
    %v848 = vadd.f32 0.0, %v847
    %v849 = vpop.f32.mrf.mxu0
    %v850 = vadd.f32 0.0, %v849
    %v851 = vpop.f32.mrf.mxu0
    %v852 = vpop.f32.mrf.mxu0
    %853 = vdwg.mxu0
    %v854 = vadd.f32 %v767, %v807
    %v855 = vadd.f32 %v768, %v809
    %v856 = vadd.f32 %v769, %v848
    %v857 = vadd.f32 %v770, %v850
    %v858 = vmul.f32 %v854, 0.5
    %v859 = vtanh.pop %v858
    %v860 = vmul.f32 %v859, 0.5
    %v861 = vadd.f32 %v860, 0.5
    %v862 = vmul.f32 %v855, 0.5
    %v863 = vtanh.pop %v862
    %v864 = vmul.f32 %v863, 0.5
    %v865 = vadd.f32 %v864, 0.5
    %v866 = vtanh.pop %v856
    %v867 = vmul.f32 %v857, 0.5
    %v868 = vtanh.pop %v867
    %v869 = vmul.f32 %v868, 0.5
    %v870 = vadd.f32 %v869, 0.5
    %v871 = vmul.f32 %v865, %v761
    %v872 = vmul.f32 %v861, %v866
    %v873 = vadd.f32 %v871, %v872
    %v874 = vtanh.pop %v873
    %v875 = vmul.f32 %v870, %v874
    %s876 = smul.u32 3, 4
    %s877 = smul.addr %s876, 8
    %s878 = scalar_lea.vmem [#allocation4], %s877
    %v879 = vld [vmem:[%s878] sm:$0xff]
    %v880 = vld [vmem:[%s878 + $0x8] sm:$0xff]
    %v881 = vld [vmem:[%s878 + $0x10] sm:$0xff]
    %v882 = vld [vmem:[%s878 + $0x18] sm:$0xff]
    %v883 = vpack.c.bf16 %v875, %v875
    %884 = vmatprep.subr.bf16.mxu0 %v513
    %885 = vmatpush1.bf16.msra.mxu0 %v512
    %886 = vmatprep.subr.bf16.mxu0 %v509
    %887 = vmatpush1.bf16.msra.mxu0 %v508
    %888 = vmatprep.subr.bf16.mxu0 %v505
    %889 = vmatpush1.bf16.msra.mxu0 %v504
    %890 = vmatprep.subr.bf16.mxu0 %v501
    %891 = vmatpush1.bf16.msra.mxu0 %v500
    %892 = vmatprep.subr.bf16.mxu0 %v497
    %893 = vmatpush1.bf16.msra.mxu0 %v496
    %894 = vmatprep.subr.bf16.mxu0 %v493
    %895 = vmatpush1.bf16.msra.mxu0 %v492
    %896 = vmatprep.subr.bf16.mxu0 %v489
    %897 = vmatpush1.bf16.msra.mxu0 %v488
    %898 = vmatprep.subr.bf16.mxu0 %v485
    %899 = vmatpush1.bf16.msra.mxu0 %v484
    %900 = vmatprep.subr.bf16.mxu0 0
    %901 = vmatpush2.bf16.msra.mxu0 0
    %902 = vmatprep.subr.bf16.mxu0 0
    %903 = vmatpush2.bf16.msra.mxu0 0
    %904 = vmatprep.subr.bf16.mxu0 0
    %905 = vmatpush2.bf16.msra.mxu0 0
    %906 = vmatprep.subr.bf16.mxu0 0
    %907 = vmatpush2.bf16.msra.mxu0 0
    %908 = vmatprep.subr.bf16.mxu0 0
    %909 = vmatpush2.bf16.msra.mxu0 0
    %910 = vmatprep.subr.bf16.mxu0 0
    %911 = vmatpush2.bf16.msra.mxu0 0
    %912 = vmatprep.subr.bf16.mxu0 0
    %913 = vmatpush2.bf16.msra.mxu0 0
    %914 = vmatprep.subr.bf16.mxu0 0
    %915 = vmatpush2.bf16.msra.mxu0 0
    %916 = vmatprep.mubr.bf16.mxu0 0
    %917 = vmatmul.mubr.bf16.gmra.mxu0 %v883
    %v918 = vpop.f32.mrf.mxu0
    %v919 = vadd.f32 0.0, %v918
    %v920 = vpop.f32.mrf.mxu0
    %v921 = vadd.f32 0.0, %v920
    %v922 = vpop.f32.mrf.mxu0
    %v923 = vpop.f32.mrf.mxu0
    %924 = vdwg.mxu0
    %925 = vmatprep.subr.bf16.mxu0 %v515
    %926 = vmatpush1.bf16.msra.mxu0 %v514
    %927 = vmatprep.subr.bf16.mxu0 %v511
    %928 = vmatpush1.bf16.msra.mxu0 %v510
    %929 = vmatprep.subr.bf16.mxu0 %v507
    %930 = vmatpush1.bf16.msra.mxu0 %v506
    %931 = vmatprep.subr.bf16.mxu0 %v503
    %932 = vmatpush1.bf16.msra.mxu0 %v502
    %933 = vmatprep.subr.bf16.mxu0 %v499
    %934 = vmatpush1.bf16.msra.mxu0 %v498
    %935 = vmatprep.subr.bf16.mxu0 %v495
    %936 = vmatpush1.bf16.msra.mxu0 %v494
    %937 = vmatprep.subr.bf16.mxu0 %v491
    %938 = vmatpush1.bf16.msra.mxu0 %v490
    %939 = vmatprep.subr.bf16.mxu0 %v487
    %940 = vmatpush1.bf16.msra.mxu0 %v486
    %941 = vmatprep.subr.bf16.mxu0 0
    %942 = vmatpush2.bf16.msra.mxu0 0
    %943 = vmatprep.subr.bf16.mxu0 0
    %944 = vmatpush2.bf16.msra.mxu0 0
    %945 = vmatprep.subr.bf16.mxu0 0
    %946 = vmatpush2.bf16.msra.mxu0 0
    %947 = vmatprep.subr.bf16.mxu0 0
    %948 = vmatpush2.bf16.msra.mxu0 0
    %949 = vmatprep.subr.bf16.mxu0 0
    %950 = vmatpush2.bf16.msra.mxu0 0
    %951 = vmatprep.subr.bf16.mxu0 0
    %952 = vmatpush2.bf16.msra.mxu0 0
    %953 = vmatprep.subr.bf16.mxu0 0
    %954 = vmatpush2.bf16.msra.mxu0 0
    %955 = vmatprep.subr.bf16.mxu0 0
    %956 = vmatpush2.bf16.msra.mxu0 0
    %957 = vmatprep.mubr.bf16.mxu0 0
    %958 = vmatmul.mubr.bf16.gmra.mxu0 %v883
    %v959 = vpop.f32.mrf.mxu0
    %v960 = vadd.f32 0.0, %v959
    %v961 = vpop.f32.mrf.mxu0
    %v962 = vadd.f32 0.0, %v961
    %v963 = vpop.f32.mrf.mxu0
    %v964 = vpop.f32.mrf.mxu0
    %965 = vdwg.mxu0
    %v966 = vadd.f32 %v879, %v919
    %v967 = vadd.f32 %v880, %v921
    %v968 = vadd.f32 %v881, %v960
    %v969 = vadd.f32 %v882, %v962
    %v970 = vmul.f32 %v966, 0.5
    %v971 = vtanh.pop %v970
    %v972 = vmul.f32 %v971, 0.5
    %v973 = vadd.f32 %v972, 0.5
    %v974 = vmul.f32 %v967, 0.5
    %v975 = vtanh.pop %v974
    %v976 = vmul.f32 %v975, 0.5
    %v977 = vadd.f32 %v976, 0.5
    %v978 = vtanh.pop %v968
    %v979 = vmul.f32 %v969, 0.5
    %v980 = vtanh.pop %v979
    %v981 = vmul.f32 %v980, 0.5
    %v982 = vadd.f32 %v981, 0.5
    %v983 = vmul.f32 %v977, %v873
    %v984 = vmul.f32 %v973, %v978
    %v985 = vadd.f32 %v983, %v984
    %v986 = vtanh.pop %v985
    %v987 = vmul.f32 %v982, %v986
    %s988 = smul.u32 4, 4
    %s989 = smul.addr %s988, 8
    %s990 = scalar_lea.vmem [#allocation4], %s989
    %v991 = vld [vmem:[%s990] sm:$0xff]
    %v992 = vld [vmem:[%s990 + $0x8] sm:$0xff]
    %v993 = vld [vmem:[%s990 + $0x10] sm:$0xff]
    %v994 = vld [vmem:[%s990 + $0x18] sm:$0xff]
    %v995 = vpack.c.bf16 %v987, %v987
    %996 = vmatprep.subr.bf16.mxu0 %v513
    %997 = vmatpush1.bf16.msra.mxu0 %v512
    %998 = vmatprep.subr.bf16.mxu0 %v509
    %999 = vmatpush1.bf16.msra.mxu0 %v508
    %1000 = vmatprep.subr.bf16.mxu0 %v505
    %1001 = vmatpush1.bf16.msra.mxu0 %v504
    %1002 = vmatprep.subr.bf16.mxu0 %v501
    %1003 = vmatpush1.bf16.msra.mxu0 %v500
    %1004 = vmatprep.subr.bf16.mxu0 %v497
    %1005 = vmatpush1.bf16.msra.mxu0 %v496
    %1006 = vmatprep.subr.bf16.mxu0 %v493
    %1007 = vmatpush1.bf16.msra.mxu0 %v492
    %1008 = vmatprep.subr.bf16.mxu0 %v489
    %1009 = vmatpush1.bf16.msra.mxu0 %v488
    %1010 = vmatprep.subr.bf16.mxu0 %v485
    %1011 = vmatpush1.bf16.msra.mxu0 %v484
    %1012 = vmatprep.subr.bf16.mxu0 0
    %1013 = vmatpush2.bf16.msra.mxu0 0
    %1014 = vmatprep.subr.bf16.mxu0 0
    %1015 = vmatpush2.bf16.msra.mxu0 0
    %1016 = vmatprep.subr.bf16.mxu0 0
    %1017 = vmatpush2.bf16.msra.mxu0 0
    %1018 = vmatprep.subr.bf16.mxu0 0
    %1019 = vmatpush2.bf16.msra.mxu0 0
    %1020 = vmatprep.subr.bf16.mxu0 0
    %1021 = vmatpush2.bf16.msra.mxu0 0
    %1022 = vmatprep.subr.bf16.mxu0 0
    %1023 = vmatpush2.bf16.msra.mxu0 0
    %1024 = vmatprep.subr.bf16.mxu0 0
    %1025 = vmatpush2.bf16.msra.mxu0 0
    %1026 = vmatprep.subr.bf16.mxu0 0
    %1027 = vmatpush2.bf16.msra.mxu0 0
    %1028 = vmatprep.mubr.bf16.mxu0 0
    %1029 = vmatmul.mubr.bf16.gmra.mxu0 %v995
    %v1030 = vpop.f32.mrf.mxu0
    %v1031 = vadd.f32 0.0, %v1030
    %v1032 = vpop.f32.mrf.mxu0
    %v1033 = vadd.f32 0.0, %v1032
    %v1034 = vpop.f32.mrf.mxu0
    %v1035 = vpop.f32.mrf.mxu0
    %1036 = vdwg.mxu0
    %1037 = vmatprep.subr.bf16.mxu0 %v515
    %1038 = vmatpush1.bf16.msra.mxu0 %v514
    %1039 = vmatprep.subr.bf16.mxu0 %v511
    %1040 = vmatpush1.bf16.msra.mxu0 %v510
    %1041 = vmatprep.subr.bf16.mxu0 %v507
    %1042 = vmatpush1.bf16.msra.mxu0 %v506
    %1043 = vmatprep.subr.bf16.mxu0 %v503
    %1044 = vmatpush1.bf16.msra.mxu0 %v502
    %1045 = vmatprep.subr.bf16.mxu0 %v499
    %1046 = vmatpush1.bf16.msra.mxu0 %v498
    %1047 = vmatprep.subr.bf16.mxu0 %v495
    %1048 = vmatpush1.bf16.msra.mxu0 %v494
    %1049 = vmatprep.subr.bf16.mxu0 %v491
    %1050 = vmatpush1.bf16.msra.mxu0 %v490
    %1051 = vmatprep.subr.bf16.mxu0 %v487
    %1052 = vmatpush1.bf16.msra.mxu0 %v486
    %1053 = vmatprep.subr.bf16.mxu0 0
    %1054 = vmatpush2.bf16.msra.mxu0 0
    %1055 = vmatprep.subr.bf16.mxu0 0
    %1056 = vmatpush2.bf16.msra.mxu0 0
    %1057 = vmatprep.subr.bf16.mxu0 0
    %1058 = vmatpush2.bf16.msra.mxu0 0
    %1059 = vmatprep.subr.bf16.mxu0 0
    %1060 = vmatpush2.bf16.msra.mxu0 0
    %1061 = vmatprep.subr.bf16.mxu0 0
    %1062 = vmatpush2.bf16.msra.mxu0 0
    %1063 = vmatprep.subr.bf16.mxu0 0
    %1064 = vmatpush2.bf16.msra.mxu0 0
    %1065 = vmatprep.subr.bf16.mxu0 0
    %1066 = vmatpush2.bf16.msra.mxu0 0
    %1067 = vmatprep.subr.bf16.mxu0 0
    %1068 = vmatpush2.bf16.msra.mxu0 0
    %1069 = vmatprep.mubr.bf16.mxu0 0
    %1070 = vmatmul.mubr.bf16.gmra.mxu0 %v995
    %v1071 = vpop.f32.mrf.mxu0
    %v1072 = vadd.f32 0.0, %v1071
    %v1073 = vpop.f32.mrf.mxu0
    %v1074 = vadd.f32 0.0, %v1073
    %v1075 = vpop.f32.mrf.mxu0
    %v1076 = vpop.f32.mrf.mxu0
    %1077 = vdwg.mxu0
    %v1078 = vadd.f32 %v991, %v1031
    %v1079 = vadd.f32 %v992, %v1033
    %v1080 = vadd.f32 %v993, %v1072
    %v1081 = vadd.f32 %v994, %v1074
    %v1082 = vmul.f32 %v1078, 0.5
    %v1083 = vtanh.pop %v1082
    %v1084 = vmul.f32 %v1083, 0.5
    %v1085 = vadd.f32 %v1084, 0.5
    %v1086 = vmul.f32 %v1079, 0.5
    %v1087 = vtanh.pop %v1086
    %v1088 = vmul.f32 %v1087, 0.5
    %v1089 = vadd.f32 %v1088, 0.5
    %v1090 = vtanh.pop %v1080
    %v1091 = vmul.f32 %v1081, 0.5
    %v1092 = vtanh.pop %v1091
    %v1093 = vmul.f32 %v1092, 0.5
    %v1094 = vadd.f32 %v1093, 0.5
    %v1095 = vmul.f32 %v1089, %v985
    %v1096 = vmul.f32 %v1085, %v1090
    %v1097 = vadd.f32 %v1095, %v1096
    %v1098 = vtanh.pop %v1097
    %v1099 = vmul.f32 %v1094, %v1098
    %s1100 = smul.u32 5, 4
    %s1101 = smul.addr %s1100, 8
    %s1102 = scalar_lea.vmem [#allocation4], %s1101
    %v1103 = vld [vmem:[%s1102] sm:$0xff]
    %v1104 = vld [vmem:[%s1102 + $0x8] sm:$0xff]
    %v1105 = vld [vmem:[%s1102 + $0x10] sm:$0xff]
    %v1106 = vld [vmem:[%s1102 + $0x18] sm:$0xff]
    %v1107 = vpack.c.bf16 %v1099, %v1099
    %1108 = vmatprep.subr.bf16.mxu0 %v513
    %1109 = vmatpush1.bf16.msra.mxu0 %v512
    %1110 = vmatprep.subr.bf16.mxu0 %v509
    %1111 = vmatpush1.bf16.msra.mxu0 %v508
    %1112 = vmatprep.subr.bf16.mxu0 %v505
    %1113 = vmatpush1.bf16.msra.mxu0 %v504
    %1114 = vmatprep.subr.bf16.mxu0 %v501
    %1115 = vmatpush1.bf16.msra.mxu0 %v500
    %1116 = vmatprep.subr.bf16.mxu0 %v497
    %1117 = vmatpush1.bf16.msra.mxu0 %v496
    %1118 = vmatprep.subr.bf16.mxu0 %v493
    %1119 = vmatpush1.bf16.msra.mxu0 %v492
    %1120 = vmatprep.subr.bf16.mxu0 %v489
    %1121 = vmatpush1.bf16.msra.mxu0 %v488
    %1122 = vmatprep.subr.bf16.mxu0 %v485
    %1123 = vmatpush1.bf16.msra.mxu0 %v484
    %1124 = vmatprep.subr.bf16.mxu0 0
    %1125 = vmatpush2.bf16.msra.mxu0 0
    %1126 = vmatprep.subr.bf16.mxu0 0
    %1127 = vmatpush2.bf16.msra.mxu0 0
    %1128 = vmatprep.subr.bf16.mxu0 0
    %1129 = vmatpush2.bf16.msra.mxu0 0
    %1130 = vmatprep.subr.bf16.mxu0 0
    %1131 = vmatpush2.bf16.msra.mxu0 0
    %1132 = vmatprep.subr.bf16.mxu0 0
    %1133 = vmatpush2.bf16.msra.mxu0 0
    %1134 = vmatprep.subr.bf16.mxu0 0
    %1135 = vmatpush2.bf16.msra.mxu0 0
    %1136 = vmatprep.subr.bf16.mxu0 0
    %1137 = vmatpush2.bf16.msra.mxu0 0
    %1138 = vmatprep.subr.bf16.mxu0 0
    %1139 = vmatpush2.bf16.msra.mxu0 0
    %1140 = vmatprep.mubr.bf16.mxu0 0
    %1141 = vmatmul.mubr.bf16.gmra.mxu0 %v1107
    %v1142 = vpop.f32.mrf.mxu0
    %v1143 = vadd.f32 0.0, %v1142
    %v1144 = vpop.f32.mrf.mxu0
    %v1145 = vadd.f32 0.0, %v1144
    %v1146 = vpop.f32.mrf.mxu0
    %v1147 = vpop.f32.mrf.mxu0
    %1148 = vdwg.mxu0
    %1149 = vmatprep.subr.bf16.mxu0 %v515
    %1150 = vmatpush1.bf16.msra.mxu0 %v514
    %1151 = vmatprep.subr.bf16.mxu0 %v511
    %1152 = vmatpush1.bf16.msra.mxu0 %v510
    %1153 = vmatprep.subr.bf16.mxu0 %v507
    %1154 = vmatpush1.bf16.msra.mxu0 %v506
    %1155 = vmatprep.subr.bf16.mxu0 %v503
    %1156 = vmatpush1.bf16.msra.mxu0 %v502
    %1157 = vmatprep.subr.bf16.mxu0 %v499
    %1158 = vmatpush1.bf16.msra.mxu0 %v498
    %1159 = vmatprep.subr.bf16.mxu0 %v495
    %1160 = vmatpush1.bf16.msra.mxu0 %v494
    %1161 = vmatprep.subr.bf16.mxu0 %v491
    %1162 = vmatpush1.bf16.msra.mxu0 %v490
    %1163 = vmatprep.subr.bf16.mxu0 %v487
    %1164 = vmatpush1.bf16.msra.mxu0 %v486
    %1165 = vmatprep.subr.bf16.mxu0 0
    %1166 = vmatpush2.bf16.msra.mxu0 0
    %1167 = vmatprep.subr.bf16.mxu0 0
    %1168 = vmatpush2.bf16.msra.mxu0 0
    %1169 = vmatprep.subr.bf16.mxu0 0
    %1170 = vmatpush2.bf16.msra.mxu0 0
    %1171 = vmatprep.subr.bf16.mxu0 0
    %1172 = vmatpush2.bf16.msra.mxu0 0
    %1173 = vmatprep.subr.bf16.mxu0 0
    %1174 = vmatpush2.bf16.msra.mxu0 0
    %1175 = vmatprep.subr.bf16.mxu0 0
    %1176 = vmatpush2.bf16.msra.mxu0 0
    %1177 = vmatprep.subr.bf16.mxu0 0
    %1178 = vmatpush2.bf16.msra.mxu0 0
    %1179 = vmatprep.subr.bf16.mxu0 0
    %1180 = vmatpush2.bf16.msra.mxu0 0
    %1181 = vmatprep.mubr.bf16.mxu0 0
    %1182 = vmatmul.mubr.bf16.gmra.mxu0 %v1107
    %v1183 = vpop.f32.mrf.mxu0
    %v1184 = vadd.f32 0.0, %v1183
    %v1185 = vpop.f32.mrf.mxu0
    %v1186 = vadd.f32 0.0, %v1185
    %v1187 = vpop.f32.mrf.mxu0
    %v1188 = vpop.f32.mrf.mxu0
    %1189 = vdwg.mxu0
    %v1190 = vadd.f32 %v1103, %v1143
    %v1191 = vadd.f32 %v1104, %v1145
    %v1192 = vadd.f32 %v1105, %v1184
    %v1193 = vadd.f32 %v1106, %v1186
    %v1194 = vmul.f32 %v1190, 0.5
    %v1195 = vtanh.pop %v1194
    %v1196 = vmul.f32 %v1195, 0.5
    %v1197 = vadd.f32 %v1196, 0.5
    %v1198 = vmul.f32 %v1191, 0.5
    %v1199 = vtanh.pop %v1198
    %v1200 = vmul.f32 %v1199, 0.5
    %v1201 = vadd.f32 %v1200, 0.5
    %v1202 = vtanh.pop %v1192
    %v1203 = vmul.f32 %v1193, 0.5
    %v1204 = vtanh.pop %v1203
    %v1205 = vmul.f32 %v1204, 0.5
    %v1206 = vadd.f32 %v1205, 0.5
    %v1207 = vmul.f32 %v1201, %v1097
    %v1208 = vmul.f32 %v1197, %v1202
    %v1209 = vadd.f32 %v1207, %v1208
    %v1210 = vtanh.pop %v1209
    %v1211 = vmul.f32 %v1206, %v1210
    %s1212 = smul.u32 6, 4
    %s1213 = smul.addr %s1212, 8
    %s1214 = scalar_lea.vmem [#allocation4], %s1213
    %v1215 = vld [vmem:[%s1214] sm:$0xff]
    %v1216 = vld [vmem:[%s1214 + $0x8] sm:$0xff]
    %v1217 = vld [vmem:[%s1214 + $0x10] sm:$0xff]
    %v1218 = vld [vmem:[%s1214 + $0x18] sm:$0xff]
    %v1219 = vpack.c.bf16 %v1211, %v1211
    %1220 = vmatprep.subr.bf16.mxu0 %v513
    %1221 = vmatpush1.bf16.msra.mxu0 %v512
    %1222 = vmatprep.subr.bf16.mxu0 %v509
    %1223 = vmatpush1.bf16.msra.mxu0 %v508
    %1224 = vmatprep.subr.bf16.mxu0 %v505
    %1225 = vmatpush1.bf16.msra.mxu0 %v504
    %1226 = vmatprep.subr.bf16.mxu0 %v501
    %1227 = vmatpush1.bf16.msra.mxu0 %v500
    %1228 = vmatprep.subr.bf16.mxu0 %v497
    %1229 = vmatpush1.bf16.msra.mxu0 %v496
    %1230 = vmatprep.subr.bf16.mxu0 %v493
    %1231 = vmatpush1.bf16.msra.mxu0 %v492
    %1232 = vmatprep.subr.bf16.mxu0 %v489
    %1233 = vmatpush1.bf16.msra.mxu0 %v488
    %1234 = vmatprep.subr.bf16.mxu0 %v485
    %1235 = vmatpush1.bf16.msra.mxu0 %v484
    %1236 = vmatprep.subr.bf16.mxu0 0
    %1237 = vmatpush2.bf16.msra.mxu0 0
    %1238 = vmatprep.subr.bf16.mxu0 0
    %1239 = vmatpush2.bf16.msra.mxu0 0
    %1240 = vmatprep.subr.bf16.mxu0 0
    %1241 = vmatpush2.bf16.msra.mxu0 0
    %1242 = vmatprep.subr.bf16.mxu0 0
    %1243 = vmatpush2.bf16.msra.mxu0 0
    %1244 = vmatprep.subr.bf16.mxu0 0
    %1245 = vmatpush2.bf16.msra.mxu0 0
    %1246 = vmatprep.subr.bf16.mxu0 0
    %1247 = vmatpush2.bf16.msra.mxu0 0
    %1248 = vmatprep.subr.bf16.mxu0 0
    %1249 = vmatpush2.bf16.msra.mxu0 0
    %1250 = vmatprep.subr.bf16.mxu0 0
    %1251 = vmatpush2.bf16.msra.mxu0 0
    %1252 = vmatprep.mubr.bf16.mxu0 0
    %1253 = vmatmul.mubr.bf16.gmra.mxu0 %v1219
    %v1254 = vpop.f32.mrf.mxu0
    %v1255 = vadd.f32 0.0, %v1254
    %v1256 = vpop.f32.mrf.mxu0
    %v1257 = vadd.f32 0.0, %v1256
    %v1258 = vpop.f32.mrf.mxu0
    %v1259 = vpop.f32.mrf.mxu0
    %1260 = vdwg.mxu0
    %1261 = vmatprep.subr.bf16.mxu0 %v515
    %1262 = vmatpush1.bf16.msra.mxu0 %v514
    %1263 = vmatprep.subr.bf16.mxu0 %v511
    %1264 = vmatpush1.bf16.msra.mxu0 %v510
    %1265 = vmatprep.subr.bf16.mxu0 %v507
    %1266 = vmatpush1.bf16.msra.mxu0 %v506
    %1267 = vmatprep.subr.bf16.mxu0 %v503
    %1268 = vmatpush1.bf16.msra.mxu0 %v502
    %1269 = vmatprep.subr.bf16.mxu0 %v499
    %1270 = vmatpush1.bf16.msra.mxu0 %v498
    %1271 = vmatprep.subr.bf16.mxu0 %v495
    %1272 = vmatpush1.bf16.msra.mxu0 %v494
    %1273 = vmatprep.subr.bf16.mxu0 %v491
    %1274 = vmatpush1.bf16.msra.mxu0 %v490
    %1275 = vmatprep.subr.bf16.mxu0 %v487
    %1276 = vmatpush1.bf16.msra.mxu0 %v486
    %1277 = vmatprep.subr.bf16.mxu0 0
    %1278 = vmatpush2.bf16.msra.mxu0 0
    %1279 = vmatprep.subr.bf16.mxu0 0
    %1280 = vmatpush2.bf16.msra.mxu0 0
    %1281 = vmatprep.subr.bf16.mxu0 0
    %1282 = vmatpush2.bf16.msra.mxu0 0
    %1283 = vmatprep.subr.bf16.mxu0 0
    %1284 = vmatpush2.bf16.msra.mxu0 0
    %1285 = vmatprep.subr.bf16.mxu0 0
    %1286 = vmatpush2.bf16.msra.mxu0 0
    %1287 = vmatprep.subr.bf16.mxu0 0
    %1288 = vmatpush2.bf16.msra.mxu0 0
    %1289 = vmatprep.subr.bf16.mxu0 0
    %1290 = vmatpush2.bf16.msra.mxu0 0
    %1291 = vmatprep.subr.bf16.mxu0 0
    %1292 = vmatpush2.bf16.msra.mxu0 0
    %1293 = vmatprep.mubr.bf16.mxu0 0
    %1294 = vmatmul.mubr.bf16.gmra.mxu0 %v1219
    %v1295 = vpop.f32.mrf.mxu0
    %v1296 = vadd.f32 0.0, %v1295
    %v1297 = vpop.f32.mrf.mxu0
    %v1298 = vadd.f32 0.0, %v1297
    %v1299 = vpop.f32.mrf.mxu0
    %v1300 = vpop.f32.mrf.mxu0
    %1301 = vdwg.mxu0
    %v1302 = vadd.f32 %v1215, %v1255
    %v1303 = vadd.f32 %v1216, %v1257
    %v1304 = vadd.f32 %v1217, %v1296
    %v1305 = vadd.f32 %v1218, %v1298
    %v1306 = vmul.f32 %v1302, 0.5
    %v1307 = vtanh.pop %v1306
    %v1308 = vmul.f32 %v1307, 0.5
    %v1309 = vadd.f32 %v1308, 0.5
    %v1310 = vmul.f32 %v1303, 0.5
    %v1311 = vtanh.pop %v1310
    %v1312 = vmul.f32 %v1311, 0.5
    %v1313 = vadd.f32 %v1312, 0.5
    %v1314 = vtanh.pop %v1304
    %v1315 = vmul.f32 %v1305, 0.5
    %v1316 = vtanh.pop %v1315
    %v1317 = vmul.f32 %v1316, 0.5
    %v1318 = vadd.f32 %v1317, 0.5
    %v1319 = vmul.f32 %v1313, %v1209
    %v1320 = vmul.f32 %v1309, %v1314
    %v1321 = vadd.f32 %v1319, %v1320
    %v1322 = vtanh.pop %v1321
    %v1323 = vmul.f32 %v1318, %v1322
    %s1324 = smul.u32 7, 4
    %s1325 = smul.addr %s1324, 8
    %s1326 = scalar_lea.vmem [#allocation4], %s1325
    %v1327 = vld [vmem:[%s1326] sm:$0xff]
    %v1328 = vld [vmem:[%s1326 + $0x8] sm:$0xff]
    %v1329 = vld [vmem:[%s1326 + $0x10] sm:$0xff]
    %v1330 = vld [vmem:[%s1326 + $0x18] sm:$0xff]
    %v1331 = vpack.c.bf16 %v1323, %v1323
    %1332 = vmatprep.subr.bf16.mxu0 %v513
    %1333 = vmatpush1.bf16.msra.mxu0 %v512
    %1334 = vmatprep.subr.bf16.mxu0 %v509
    %1335 = vmatpush1.bf16.msra.mxu0 %v508
    %1336 = vmatprep.subr.bf16.mxu0 %v505
    %1337 = vmatpush1.bf16.msra.mxu0 %v504
    %1338 = vmatprep.subr.bf16.mxu0 %v501
    %1339 = vmatpush1.bf16.msra.mxu0 %v500
    %1340 = vmatprep.subr.bf16.mxu0 %v497
    %1341 = vmatpush1.bf16.msra.mxu0 %v496
    %1342 = vmatprep.subr.bf16.mxu0 %v493
    %1343 = vmatpush1.bf16.msra.mxu0 %v492
    %1344 = vmatprep.subr.bf16.mxu0 %v489
    %1345 = vmatpush1.bf16.msra.mxu0 %v488
    %1346 = vmatprep.subr.bf16.mxu0 %v485
    %1347 = vmatpush1.bf16.msra.mxu0 %v484
    %1348 = vmatprep.subr.bf16.mxu0 0
    %1349 = vmatpush2.bf16.msra.mxu0 0
    %1350 = vmatprep.subr.bf16.mxu0 0
    %1351 = vmatpush2.bf16.msra.mxu0 0
    %1352 = vmatprep.subr.bf16.mxu0 0
    %1353 = vmatpush2.bf16.msra.mxu0 0
    %1354 = vmatprep.subr.bf16.mxu0 0
    %1355 = vmatpush2.bf16.msra.mxu0 0
    %1356 = vmatprep.subr.bf16.mxu0 0
    %1357 = vmatpush2.bf16.msra.mxu0 0
    %1358 = vmatprep.subr.bf16.mxu0 0
    %1359 = vmatpush2.bf16.msra.mxu0 0
    %1360 = vmatprep.subr.bf16.mxu0 0
    %1361 = vmatpush2.bf16.msra.mxu0 0
    %1362 = vmatprep.subr.bf16.mxu0 0
    %1363 = vmatpush2.bf16.msra.mxu0 0
    %1364 = vmatprep.mubr.bf16.mxu0 0
    %1365 = vmatmul.mubr.bf16.gmra.mxu0 %v1331
    %v1366 = vpop.f32.mrf.mxu0
    %v1367 = vadd.f32 0.0, %v1366
    %v1368 = vpop.f32.mrf.mxu0
    %v1369 = vadd.f32 0.0, %v1368
    %v1370 = vpop.f32.mrf.mxu0
    %v1371 = vpop.f32.mrf.mxu0
    %1372 = vdwg.mxu0
    %1373 = vmatprep.subr.bf16.mxu0 %v515
    %1374 = vmatpush1.bf16.msra.mxu0 %v514
    %1375 = vmatprep.subr.bf16.mxu0 %v511
    %1376 = vmatpush1.bf16.msra.mxu0 %v510
    %1377 = vmatprep.subr.bf16.mxu0 %v507
    %1378 = vmatpush1.bf16.msra.mxu0 %v506
    %1379 = vmatprep.subr.bf16.mxu0 %v503
    %1380 = vmatpush1.bf16.msra.mxu0 %v502
    %1381 = vmatprep.subr.bf16.mxu0 %v499
    %1382 = vmatpush1.bf16.msra.mxu0 %v498
    %1383 = vmatprep.subr.bf16.mxu0 %v495
    %1384 = vmatpush1.bf16.msra.mxu0 %v494
    %1385 = vmatprep.subr.bf16.mxu0 %v491
    %1386 = vmatpush1.bf16.msra.mxu0 %v490
    %1387 = vmatprep.subr.bf16.mxu0 %v487
    %1388 = vmatpush1.bf16.msra.mxu0 %v486
    %1389 = vmatprep.subr.bf16.mxu0 0
    %1390 = vmatpush2.bf16.msra.mxu0 0
    %1391 = vmatprep.subr.bf16.mxu0 0
    %1392 = vmatpush2.bf16.msra.mxu0 0
    %1393 = vmatprep.subr.bf16.mxu0 0
    %1394 = vmatpush2.bf16.msra.mxu0 0
    %1395 = vmatprep.subr.bf16.mxu0 0
    %1396 = vmatpush2.bf16.msra.mxu0 0
    %1397 = vmatprep.subr.bf16.mxu0 0
    %1398 = vmatpush2.bf16.msra.mxu0 0
    %1399 = vmatprep.subr.bf16.mxu0 0
    %1400 = vmatpush2.bf16.msra.mxu0 0
    %1401 = vmatprep.subr.bf16.mxu0 0
    %1402 = vmatpush2.bf16.msra.mxu0 0
    %1403 = vmatprep.subr.bf16.mxu0 0
    %1404 = vmatpush2.bf16.msra.mxu0 0
    %1405 = vmatprep.mubr.bf16.mxu0 0
    %1406 = vmatmul.mubr.bf16.gmra.mxu0 %v1331
    %v1407 = vpop.f32.mrf.mxu0
    %v1408 = vadd.f32 0.0, %v1407
    %v1409 = vpop.f32.mrf.mxu0
    %v1410 = vadd.f32 0.0, %v1409
    %v1411 = vpop.f32.mrf.mxu0
    %v1412 = vpop.f32.mrf.mxu0
    %1413 = vdwg.mxu0
    %v1414 = vadd.f32 %v1327, %v1367
    %v1415 = vadd.f32 %v1328, %v1369
    %v1416 = vadd.f32 %v1329, %v1408
    %v1417 = vadd.f32 %v1330, %v1410
    %v1418 = vmul.f32 %v1414, 0.5
    %v1419 = vtanh.pop %v1418
    %v1420 = vmul.f32 %v1419, 0.5
    %v1421 = vadd.f32 %v1420, 0.5
    %v1422 = vmul.f32 %v1415, 0.5
    %v1423 = vtanh.pop %v1422
    %v1424 = vmul.f32 %v1423, 0.5
    %v1425 = vadd.f32 %v1424, 0.5
    %v1426 = vtanh.pop %v1416
    %v1427 = vmul.f32 %v1417, 0.5
    %v1428 = vtanh.pop %v1427
    %v1429 = vmul.f32 %v1428, 0.5
    %v1430 = vadd.f32 %v1429, 0.5
    %v1431 = vmul.f32 %v1425, %v1321
    %v1432 = vmul.f32 %v1421, %v1426
    %v1433 = vadd.f32 %v1431, %v1432
    %v1434 = vtanh.pop %v1433
    %v1435 = vmul.f32 %v1430, %v1434
    %1436 = vst [vmem:[#allocation2] sm:$0xff] %v1435
    %1437 = vst [vmem:[#allocation3] sm:$0xff] %v1433
    // Predicated region
    $region38: #{tpu_custom_call.1} parent=1 // pred_check
      %p1438 = pneg %p75
    $region39: #{tpu_custom_call.1} parent=1 // pred_check_branch
      %1440 = sbr.rel (%p1438) target = $region41
    $region40: #{tpu_custom_call.1} parent=1 // pred_region
      %v1441 = vpack.c.bf16 %v1435, %v1435
      %v1442 = vld [vmem:[#allocation8] sm:$0xf]
      %v1443 = vld [vmem:[#allocation8 + $0x4] sm:$0xf]
      %v1444 = vld [vmem:[#allocation8 + $0x8] sm:$0xf]
      %v1445 = vld [vmem:[#allocation8 + $0xc] sm:$0xf]
      %v1446 = vld [vmem:[#allocation8 + $0x10] sm:$0xf]
      %v1447 = vld [vmem:[#allocation8 + $0x14] sm:$0xf]
      %v1448 = vld [vmem:[#allocation8 + $0x18] sm:$0xf]
      %v1449 = vld [vmem:[#allocation8 + $0x1c] sm:$0xf]
      %v1450 = vld [vmem:[#allocation8 + $0x20] sm:$0xf]
      %v1451 = vld [vmem:[#allocation8 + $0x24] sm:$0xf]
      %v1452 = vld [vmem:[#allocation8 + $0x28] sm:$0xf]
      %v1453 = vld [vmem:[#allocation8 + $0x2c] sm:$0xf]
      %v1454 = vld [vmem:[#allocation8 + $0x30] sm:$0xf]
      %v1455 = vld [vmem:[#allocation8 + $0x34] sm:$0xf]
      %v1456 = vld [vmem:[#allocation8 + $0x38] sm:$0xf]
      %v1457 = vld [vmem:[#allocation8 + $0x3c] sm:$0xf]
      %v1458 = vld [vmem:[%s5] sm:$0x1]
      %v1460 = vlaneseq
      %v1461 = vshrl.u32 %v1460, 7
      %v1462 = vsub.s32 0, %v1461
      %v1463 = vrot.slane %v1458, %v1462
      %v1481 = vunpack.c.l.b16 %v1442
      %v1482 = vunpack.c.l.b16 %v1443
      %v1483 = vunpack.c.l.b16 %v1444
      %v1484 = vunpack.c.l.b16 %v1445
      %v1485 = vunpack.c.l.b16 %v1446
      %v1486 = vunpack.c.l.b16 %v1447
      %v1487 = vunpack.c.l.b16 %v1448
      %v1488 = vunpack.c.l.b16 %v1449
      %v1489 = vunpack.c.l.b16 %v1450
      %v1490 = vunpack.c.l.b16 %v1451
      %v1491 = vunpack.c.l.b16 %v1452
      %v1492 = vunpack.c.l.b16 %v1453
      %v1493 = vunpack.c.l.b16 %v1454
      %v1494 = vunpack.c.l.b16 %v1455
      %v1495 = vunpack.c.l.b16 %v1456
      %v1496 = vunpack.c.l.b16 %v1457
      %v1497 = vpack.c.b16 %v1482, %v1481
      %v1498 = vpack.c.b16 %v1484, %v1483
      %v1499 = vpack.c.b16 %v1486, %v1485
      %v1500 = vpack.c.b16 %v1488, %v1487
      %v1501 = vpack.c.b16 %v1490, %v1489
      %v1502 = vpack.c.b16 %v1492, %v1491
      %v1503 = vpack.c.b16 %v1494, %v1493
      %v1504 = vpack.c.b16 %v1496, %v1495
      %1513 = vmatprep.subr.bf16.mxu0 0
      %1514 = vmatpush1.bf16.msra.mxu0 %v1504
      %1515 = vmatprep.subr.bf16.mxu0 0
      %1516 = vmatpush1.bf16.msra.mxu0 %v1503
      %1517 = vmatprep.subr.bf16.mxu0 0
      %1518 = vmatpush1.bf16.msra.mxu0 %v1502
      %1519 = vmatprep.subr.bf16.mxu0 0
      %1520 = vmatpush1.bf16.msra.mxu0 %v1501
      %1521 = vmatprep.subr.bf16.mxu0 0
      %1522 = vmatpush1.bf16.msra.mxu0 %v1500
      %1523 = vmatprep.subr.bf16.mxu0 0
      %1524 = vmatpush1.bf16.msra.mxu0 %v1499
      %1525 = vmatprep.subr.bf16.mxu0 0
      %1526 = vmatpush1.bf16.msra.mxu0 %v1498
      %1527 = vmatprep.subr.bf16.mxu0 0
      %1528 = vmatpush1.bf16.msra.mxu0 %v1497
      %1529 = vmatprep.subr.bf16.mxu0 0
      %1530 = vmatpush2.bf16.msra.mxu0 0
      %1531 = vmatprep.subr.bf16.mxu0 0
      %1532 = vmatpush2.bf16.msra.mxu0 0
      %1533 = vmatprep.subr.bf16.mxu0 0
      %1534 = vmatpush2.bf16.msra.mxu0 0
      %1535 = vmatprep.subr.bf16.mxu0 0
      %1536 = vmatpush2.bf16.msra.mxu0 0
      %1537 = vmatprep.subr.bf16.mxu0 0
      %1538 = vmatpush2.bf16.msra.mxu0 0
      %1539 = vmatprep.subr.bf16.mxu0 0
      %1540 = vmatpush2.bf16.msra.mxu0 0
      %1541 = vmatprep.subr.bf16.mxu0 0
      %1542 = vmatpush2.bf16.msra.mxu0 0
      %1543 = vmatprep.subr.bf16.mxu0 0
      %1544 = vmatpush2.bf16.msra.mxu0 0
      %1545 = vmatprep.mubr.bf16.mxu0 0
      %1546 = vmatmul.mubr.bf16.gmra.mxu0 %v1441
      %v1547 = vpop.f32.mrf.mxu0
      %v1548 = vadd.f32 %v1463, %v1547
      %v1549 = vpop.f32.mrf.mxu0
      %v1550 = vpop.f32.mrf.mxu0
      %v1551 = vpop.f32.mrf.mxu0
      %1552 = vdwg.mxu0
      %1553 = vst [vmem:[#allocation10] sm:$0xff] %v1548
    $region41: #{tpu_custom_call.1} parent=1 // pred_fallthru
      _
    // Predicated region
    $region42: #{tpu_custom_call.1} parent=1 // pred_check
      _
    $region43: #{tpu_custom_call.1} parent=1 // pred_check_branch
      %1555 = sbr.rel (0) target = $region45
    $region44: #{tpu_custom_call.1} parent=1 // pred_region
      %s1557 = ssub.s32 128, 128
      %1558 = vsyncadd [#allocation7], %s1557
      %s1560 = sshll.u32 [#allocation10], 4
      %s1561 = int_to_ptr.vmem [resolvable:$true] %s1560
      %1563 = dma.vmem_to_hbm [thread:$0]  %s1561, 128, %s6, [#allocation7]
    $region45: #{tpu_custom_call.1} parent=1 // pred_fallthru
      _
    // Predicated region
    $region46: #{tpu_custom_call.1} parent=1 // pred_check
      _
    $region47: #{tpu_custom_call.1} parent=1 // pred_check_branch
      %1565 = sbr.rel (0) target = $region49
    $region48: #{tpu_custom_call.1} parent=1 // pred_region
      %1566 = dma.done [#allocation7], 128
    $region49: #{tpu_custom_call.1} parent=1 // pred_fallthru
      _
    %1567 = vsyncpa [#allocation6], 1
    %1568 = vsyncpa [#allocation9], 1
    %1569 = vsyncpa [#allocation7], 1

</llo_original>
